<compile_context>
chip_gen: v6e
topology: v6e:2x2x1
jax: 0.10.0
libtpu: 0.0.40
codegen_flags: <defaults>
</compile_context>

<pallas_src>
import functools

import jax
import jax.numpy as jnp
from jax.experimental import pallas as pl
from jax.experimental.pallas import tpu as pltpu

# Hyper-parameters fixed by the PyTorch module definition
NF = 40          # nFilt_FirstLayer == nFiltLaterLayer
K1 = 25          # temporal kernel length of the first conv  (1, 25)
POOL_K = 75      # AvgPool2d kernel (1, 75)
POOL_S = 15      # AvgPool2d stride (1, 15)
BN_EPS = 1e-5
LOG_EPS = 1e-6


def _round_up(v, m):
    return ((v + m - 1) // m) * m


def _shallow_kernel(x_ref, weff_ref, shift_ref, pm_ref, wl_ref, bl_ref,
                    out_ref, z_ref, p_scr, *, bt, nchan, t1, t1_pad, tpool, nclass):
    # ---- im2col into VMEM scratch, lane-aligned per-sample column blocks ----
    # P[k*nchan + c, b*t1_pad + t] = x[b, c, t + k].  col0 is a multiple of 128,
    # so every slab store starts lane-aligned.  Pad columns [t1, t1_pad) are
    # never read downstream (matmuls only consume t1 columns per block).
    for b in range(bt):
        col0 = b * t1_pad
        for k in range(K1):
            p_scr[k * nchan:(k + 1) * nchan, col0:col0 + t1] = x_ref[b, :, k:k + t1]

    weff = weff_ref[...]            # (NF, K1*nchan), BN scale already folded in
    shift = shift_ref[...]          # (NF, 1)   BN shift + folded conv bias
    pm = pm_ref[...]                # (t1, tpool) single-sample pooling matrix

    z_blocks = []
    logit_cols = []
    for b in range(bt):
        col0 = b * t1_pad
        # fused conv1 (temporal) + conv2 (spatial) + BN scale: one MXU matmul,
        # contraction dim K = nchan*K1, reading an aligned static slice of p_scr.
        acc = jnp.dot(weff, p_scr[:, col0:col0 + t1],
                      preferred_element_type=jnp.float32)          # (NF, t1)
        y = acc + shift                                            # BN shift
        y = y * y                                                  # square
        pooled = jnp.dot(y, pm, preferred_element_type=jnp.float32)  # (NF, tpool)
        z_b = jnp.log(jnp.maximum(pooled, LOG_EPS))                # safe_log
        z_blocks.append(z_b)

        # lastLayer Conv2d(40 -> nClass, (1, tpool)): tiny per-class reduce.
        cols = []
        for a in range(nclass):
            r = jnp.sum(wl_ref[a] * z_b, axis=1, keepdims=True)    # (NF, 1)
            cols.append(jnp.sum(r, axis=0, keepdims=True))         # (1, 1)
        logit_cols.append(jnp.concatenate(cols, axis=0))           # (nclass, 1)

    # Dropout is identity at inference; Z is the first-block output.
    z_ref[0] = jnp.concatenate(z_blocks, axis=1).astype(z_ref.dtype)

    logits = jnp.concatenate(logit_cols, axis=1) + bl_ref[...]     # (nclass, bt)
    # LogSoftmax over the class axis (sublanes)
    m = jnp.max(logits, axis=0, keepdims=True)
    lse = m + jnp.log(jnp.sum(jnp.exp(logits - m), axis=0, keepdims=True))
    out_ref[0] = (logits - lse).astype(out_ref.dtype)


def _vmem_caps():
    """Generation-aware (budget, scoped-limit) in bytes."""
    try:
        cap = int(pltpu.get_tpu_info().vmem_capacity_bytes)
    except Exception:
        cap = 64 << 20                      # conservative (v7x per-TC physical)
    budget = min(24 << 20, cap // 3)        # working-set target for bt selection
    limit = min(cap * 3 // 4, 48 << 20)     # raised scoped-VMEM limit
    return budget, limit


def _vmem_estimate(bt, nchan, ntime, t1, t1_pad, tpool, nclass):
    """Per-grid-step VMEM estimate, including double-buffered operands/outputs."""
    f32 = 4
    x_blk = 2 * bt * nchan * ntime * f32                       # input block (x2 buf)
    p_scr = K1 * nchan * bt * t1_pad * f32                     # im2col scratch
    consts = 2 * (NF * K1 * nchan                              # fused weight
                  + NF                                         # shift
                  + t1 * tpool                                 # pooling matrix
                  + nclass * NF * tpool                        # last-layer weight
                  + nclass) * f32                              # last-layer bias
    outs = 2 * (nclass * bt + NF * bt * tpool) * f32           # output blocks (x2 buf)
    interm = (3 * NF * t1_pad + 2 * NF * bt * tpool) * f32     # live intermediates
    return x_blk + p_scr + consts + outs + interm


def _choose_block_b(B, nchan, ntime, nclass, budget, max_bt=8):
    """Largest per-step batch that divides B, fits the VMEM budget, keeps the
    unrolled im2col bounded, and (preferably) gives an even number of grid
    steps so v7x's two TensorCores split the work evenly."""
    t1 = ntime - K1 + 1
    tpool = (t1 - POOL_K) // POOL_S + 1
    t1_pad = _round_up(t1, 128)
    fits = [bt for bt in range(1, min(B, max_bt) + 1)
            if B % bt == 0
            and _vmem_estimate(bt, nchan, ntime, t1, t1_pad, tpool, nclass) <= budget]
    if not fits:
        return 1
    even = [bt for bt in fits if (B // bt) >= 2 and (B // bt) % 2 == 0]
    geq2 = [bt for bt in fits if (B // bt) >= 2]
    for tier in (even, geq2, fits):
        if tier:
            return max(tier)
    return 1


def shallow_conv_net(x, params, block_b=None):
    """x: (B, 1, nChan, nTime) float32 (NCHW). Returns (log_probs (B, nClass), [Z])."""
    w1, b1, w2c, gamma, beta, mean, var, wl3, bl = params
    B, _, nchan, ntime = x.shape
    t1 = ntime - K1 + 1
    tpool = (t1 - POOL_K) // POOL_S + 1
    nclass = wl3.shape[0]
    t1_pad = _round_up(t1, 128)

    budget, vmem_limit = _vmem_caps()
    bt = block_b if block_b is not None else _choose_block_b(B, nchan, ntime,
                                                             nclass, budget)
    assert B % bt == 0, "batch must be divisible by the per-step block size"
    grid_b = B // bt

    # ---- pure-JAX parameter prep (tiny, data independent) ----
    # Fused conv1+conv2: W_eff[f, k*nchan + c] = sum_g w2c[c, f, g] * w1[g, k]
    w_eff = jnp.einsum('cfg,gk->fkc', w2c, w1).reshape(NF, K1 * nchan)
    b_eff = jnp.einsum('cfg,g->f', w2c, b1)
    # BatchNorm (eval): fold the scale into the weights, keep only the shift.
    scale = gamma / jnp.sqrt(var + BN_EPS)
    w_eff = (w_eff * scale[:, None]).astype(jnp.float32)
    shift = ((b_eff - mean) * scale + beta).reshape(NF, 1).astype(jnp.float32)
    # Single-sample AvgPool matrix (t1, tpool) with 1/POOL_K entries.
    jj = jnp.arange(t1)[:, None]
    pp = jnp.arange(tpool)[None, :]
    pm_local = (((jj >= pp * POOL_S) & (jj < pp * POOL_S + POOL_K))
                .astype(jnp.float32) / POOL_K)
    wl_c = wl3.astype(jnp.float32)                       # (nclass, NF, tpool)
    bl_c = bl.reshape(nclass, 1).astype(jnp.float32)

    xs = x[:, 0].astype(jnp.float32)                     # (B, nChan, nTime)

    kern = functools.partial(_shallow_kernel, bt=bt, nchan=nchan, t1=t1,
                             t1_pad=t1_pad, tpool=tpool, nclass=nclass)

    out, z = pl.pallas_call(
        kern,
        out_shape=(jax.ShapeDtypeStruct((grid_b, nclass, bt), jnp.float32),
                   jax.ShapeDtypeStruct((grid_b, NF, bt * tpool), jnp.float32)),
        grid_spec=pltpu.PrefetchScalarGridSpec(
            num_scalar_prefetch=0,
            grid=(grid_b,),
            in_specs=[
                pl.BlockSpec((bt, nchan, ntime), lambda i: (i, 0, 0)),        # x block
                pl.BlockSpec((NF, K1 * nchan), lambda i: (0, 0)),             # fused conv weight (BN-scaled)
                pl.BlockSpec((NF, 1), lambda i: (0, 0)),                      # BN shift (+conv bias)
                pl.BlockSpec((t1, tpool), lambda i: (0, 0)),                  # per-sample pooling matrix
                pl.BlockSpec((nclass, NF, tpool), lambda i: (0, 0, 0)),       # last-layer weight
                pl.BlockSpec((nclass, 1), lambda i: (0, 0)),                  # last-layer bias
            ],
            out_specs=[
                pl.BlockSpec((1, nclass, bt), lambda i: (i, 0, 0)),
                pl.BlockSpec((1, NF, bt * tpool), lambda i: (i, 0, 0)),
            ],
            scratch_shapes=[pltpu.VMEM((K1 * nchan, bt * t1_pad), jnp.float32)],
        ),
        compiler_params=pltpu.CompilerParams(
            dimension_semantics=("parallel",),
            vmem_limit_bytes=int(vmem_limit)),
    )(xs, w_eff, shift, pm_local, wl_c, bl_c)

    # Re-layout the lane-dense kernel outputs back to the PyTorch layout.
    out = out.transpose(0, 2, 1).reshape(B, nclass)
    Z = (z.reshape(grid_b, NF, bt, tpool)
          .transpose(0, 2, 1, 3)
          .reshape(B, NF, 1, tpool))                     # matches PyTorch Z
    return out, [Z]


def _renorm(w, maxnorm, eps=1e-7):
    """torch.renorm(w, p=2, dim=0, maxnorm): rescale each out-filter slice to L2 <= maxnorm."""
    flat = w.reshape(w.shape[0], -1)
    norms = jnp.sqrt(jnp.sum(flat * flat, axis=1))
    scale = jnp.where(norms > maxnorm, maxnorm / (norms + eps), 1.0)
    return w * scale.reshape((-1,) + (1,) * (w.ndim - 1))


def init_params(key, nchan, ntime, nclass):
    t1 = ntime - K1 + 1
    tpool = (t1 - POOL_K) // POOL_S + 1
    ks = jax.random.split(key, 9)
    # Conv2dWithConstraint(1, 40, (1,25), max_norm=2), with bias
    w1_full = 0.2 * jax.random.normal(ks[0], (NF, 1, 1, K1), jnp.float32)
    b1 = 0.05 * jax.random.normal(ks[1], (NF,), jnp.float32)
    # Conv2dWithConstraint(40, 40, (nChan,1), bias=False, max_norm=2)
    w2_full = 0.1 * jax.random.normal(ks[2], (NF, NF, nchan, 1), jnp.float32)
    # BatchNorm2d(40) eval-mode parameters / running stats
    gamma = 1.0 + 0.1 * jax.random.normal(ks[3], (NF,), jnp.float32)
    beta = 0.1 * jax.random.normal(ks[4], (NF,), jnp.float32)
    mean = 0.05 * jax.random.normal(ks[5], (NF,), jnp.float32)
    var = 1.0 + 0.1 * jax.random.uniform(ks[6], (NF,), jnp.float32)
    # lastLayer: Conv2dWithConstraint(40, nClass, (1, tpool), max_norm=0.5), with bias
    wl_full = 0.2 * jax.random.normal(ks[7], (nclass, NF, 1, tpool), jnp.float32)
    bl = 0.05 * jax.random.normal(ks[8], (nclass,), jnp.float32)

    # max-norm weight constraint (done once here; data-independent parameter setup)
    w1_full = _renorm(w1_full, 2.0)
    w2_full = _renorm(w2_full, 2.0)
    wl_full = _renorm(wl_full, 0.5)

    w1 = w1_full.reshape(NF, K1)                         # (g, k)
    w2c = jnp.transpose(w2_full[..., 0], (2, 0, 1))      # (c, f_out, f_in=g)
    wl3 = wl_full[:, :, 0, :]                            # (nclass, f, p)
    return (w1, b1, w2c, gamma, beta, mean, var, wl3, bl)


def reference_forward(x, params):
    """Pure-JAX reference of the eval-mode forward (eps=0 branch), unfused math."""
    w1, b1, w2c, gamma, beta, mean, var, wl3, bl = params
    B, _, nchan, ntime = x.shape
    t1 = ntime - K1 + 1
    tpool = (t1 - POOL_K) // POOL_S + 1
    xs = x[:, 0]                                                        # (B, C, T)
    pat = jnp.stack([xs[:, :, k:k + t1] for k in range(K1)], axis=-1)   # (B, C, t1, K1)
    conv1 = jnp.einsum('bctk,gk->bgct', pat, w1) + b1[None, :, None, None]
    conv2 = jnp.einsum('bgct,cfg->bft', conv1, w2c)
    g = gamma[None, :, None]; be = beta[None, :, None]
    mu = mean[None, :, None]; v = var[None, :, None]
    y = (conv2 - mu) * g / jnp.sqrt(v + BN_EPS) + be
    y = y * y
    pooled = jnp.stack([jnp.mean(y[:, :, p * POOL_S:p * POOL_S + POOL_K], axis=2)
                        for p in range(tpool)], axis=2)                 # (B, NF, tpool)
    z = jnp.log(jnp.maximum(pooled, LOG_EPS))
    logits = jnp.einsum('bfp,afp->ba', z, wl3) + bl[None, :]
    out = jax.nn.log_softmax(logits, axis=1)
    return out, z.reshape(B, NF, 1, tpool)


if __name__ == "__main__":
    # Small but structurally valid shapes: nTime must be >= 99 for the (1,75)/15 pool.
    B, nchan, ntime, nclass = 4, 8, 128, 2
    key = jax.random.PRNGKey(0)
    kx, kp = jax.random.split(key)
    x = jax.random.normal(kx, (B, 1, nchan, ntime), jnp.float32)
    params = init_params(kp, nchan, ntime, nclass)

    out, z_list = shallow_conv_net(x, params)
    out = jax.block_until_ready(out)
    Z = jax.block_until_ready(z_list[0])

    ref_out, ref_Z = reference_forward(x, params)
    assert out.shape == (B, nclass) and Z.shape == ref_Z.shape
    assert jnp.allclose(out, ref_out, rtol=1e-4, atol=1e-4), "log-prob mismatch"
    assert jnp.allclose(Z, ref_Z, rtol=1e-4, atol=1e-4), "feature-map mismatch"
    print("KERNEL_OK")
</pallas_src>

<mosaic_0001>
module attributes {stable_mosaic.version = 11 : i64} {
  func.func @_shallow_kernel(%arg0: i32, %arg1: memref<2x8x128xf32, #tpu.memory_space<vmem>>, %arg2: memref<40x200xf32, #tpu.memory_space<vmem>>, %arg3: memref<40x1xf32, #tpu.memory_space<vmem>>, %arg4: memref<104x2xf32, #tpu.memory_space<vmem>>, %arg5: memref<2x40x2xf32, #tpu.memory_space<vmem>>, %arg6: memref<2x1xf32, #tpu.memory_space<vmem>>, %arg7: memref<1x2x2xf32, #tpu.memory_space<vmem>>, %arg8: memref<1x40x4xf32, #tpu.memory_space<vmem>>, %arg9: memref<200x256xf32, #tpu.memory_space<vmem>>) attributes {dimension_semantics = [#tpu.dimension_semantics<parallel>], iteration_bounds = array<i64: 2>, scalar_prefetch = 0 : i64, scratch_operands = 1 : i64, tpu.core_type = #tpu.core_type<tc>, window_params = [{transform_indices = @transform_0, window_bounds = array<i64: 2, 8, 128>}, {pipeline_mode = #tpu.pipeline_mode<synchronous>, transform_indices = @transform_1, window_bounds = array<i64: 40, 200>}, {pipeline_mode = #tpu.pipeline_mode<synchronous>, transform_indices = @transform_2, window_bounds = array<i64: 40, 1>}, {pipeline_mode = #tpu.pipeline_mode<synchronous>, transform_indices = @transform_3, window_bounds = array<i64: 104, 2>}, {pipeline_mode = #tpu.pipeline_mode<synchronous>, transform_indices = @transform_4, window_bounds = array<i64: 2, 40, 2>}, {pipeline_mode = #tpu.pipeline_mode<synchronous>, transform_indices = @transform_5, window_bounds = array<i64: 2, 1>}, {transform_indices = @transform_6, window_bounds = array<i64: 1, 2, 2>}, {transform_indices = @transform_7, window_bounds = array<i64: 1, 40, 4>}]} {
    %c0 = arith.constant 0 : index
    %c0_0 = arith.constant 0 : index
    %c0_1 = arith.constant 0 : index
    %0 = vector.load %arg1[%c0, %c0_0, %c0_1] : memref<2x8x128xf32, #tpu.memory_space<vmem>>, vector<1x8x104xf32>
    %1 = vector.shape_cast %0 : vector<1x8x104xf32> to vector<8x104xf32>
    %c0_2 = arith.constant 0 : index
    %c0_3 = arith.constant 0 : index
    %2 = vector.load %arg9[%c0_2, %c0_3] : memref<200x256xf32, #tpu.memory_space<vmem>>, vector<8x104xf32>
    tpu.vector_store %arg9[%c0_2, %c0_3], %1 {strides = array<i32>} : memref<200x256xf32, #tpu.memory_space<vmem>>, vector<8x104xf32>,
    %c0_4 = arith.constant 0 : index
    %c0_5 = arith.constant 0 : index
    %c1 = arith.constant 1 : index
    %3 = vector.load %arg1[%c0_4, %c0_5, %c1] : memref<2x8x128xf32, #tpu.memory_space<vmem>>, vector<1x8x104xf32>
    %4 = vector.shape_cast %3 : vector<1x8x104xf32> to vector<8x104xf32>
    %c8 = arith.constant 8 : index
    %c0_6 = arith.constant 0 : index
    %5 = vector.load %arg9[%c8, %c0_6] : memref<200x256xf32, #tpu.memory_space<vmem>>, vector<8x104xf32>
    tpu.vector_store %arg9[%c8, %c0_6], %4 {strides = array<i32>} : memref<200x256xf32, #tpu.memory_space<vmem>>, vector<8x104xf32>,
    %c0_7 = arith.constant 0 : index
    %c0_8 = arith.constant 0 : index
    %c2 = arith.constant 2 : index
    %6 = vector.load %arg1[%c0_7, %c0_8, %c2] : memref<2x8x128xf32, #tpu.memory_space<vmem>>, vector<1x8x104xf32>
    %7 = vector.shape_cast %6 : vector<1x8x104xf32> to vector<8x104xf32>
    %c16 = arith.constant 16 : index
    %c0_9 = arith.constant 0 : index
    %8 = vector.load %arg9[%c16, %c0_9] : memref<200x256xf32, #tpu.memory_space<vmem>>, vector<8x104xf32>
    tpu.vector_store %arg9[%c16, %c0_9], %7 {strides = array<i32>} : memref<200x256xf32, #tpu.memory_space<vmem>>, vector<8x104xf32>,
    %c0_10 = arith.constant 0 : index
    %c0_11 = arith.constant 0 : index
    %c3 = arith.constant 3 : index
    %9 = vector.load %arg1[%c0_10, %c0_11, %c3] : memref<2x8x128xf32, #tpu.memory_space<vmem>>, vector<1x8x104xf32>
    %10 = vector.shape_cast %9 : vector<1x8x104xf32> to vector<8x104xf32>
    %c24 = arith.constant 24 : index
    %c0_12 = arith.constant 0 : index
    %11 = vector.load %arg9[%c24, %c0_12] : memref<200x256xf32, #tpu.memory_space<vmem>>, vector<8x104xf32>
    tpu.vector_store %arg9[%c24, %c0_12], %10 {strides = array<i32>} : memref<200x256xf32, #tpu.memory_space<vmem>>, vector<8x104xf32>,
    %c0_13 = arith.constant 0 : index
    %c0_14 = arith.constant 0 : index
    %c4 = arith.constant 4 : index
    %12 = vector.load %arg1[%c0_13, %c0_14, %c4] : memref<2x8x128xf32, #tpu.memory_space<vmem>>, vector<1x8x104xf32>
    %13 = vector.shape_cast %12 : vector<1x8x104xf32> to vector<8x104xf32>
    %c32 = arith.constant 32 : index
    %c0_15 = arith.constant 0 : index
    %14 = vector.load %arg9[%c32, %c0_15] : memref<200x256xf32, #tpu.memory_space<vmem>>, vector<8x104xf32>
    tpu.vector_store %arg9[%c32, %c0_15], %13 {strides = array<i32>} : memref<200x256xf32, #tpu.memory_space<vmem>>, vector<8x104xf32>,
    %c0_16 = arith.constant 0 : index
    %c0_17 = arith.constant 0 : index
    %c5 = arith.constant 5 : index
    %15 = vector.load %arg1[%c0_16, %c0_17, %c5] : memref<2x8x128xf32, #tpu.memory_space<vmem>>, vector<1x8x104xf32>
    %16 = vector.shape_cast %15 : vector<1x8x104xf32> to vector<8x104xf32>
    %c40 = arith.constant 40 : index
    %c0_18 = arith.constant 0 : index
    %17 = vector.load %arg9[%c40, %c0_18] : memref<200x256xf32, #tpu.memory_space<vmem>>, vector<8x104xf32>
    tpu.vector_store %arg9[%c40, %c0_18], %16 {strides = array<i32>} : memref<200x256xf32, #tpu.memory_space<vmem>>, vector<8x104xf32>,
    %c0_19 = arith.constant 0 : index
    %c0_20 = arith.constant 0 : index
    %c6 = arith.constant 6 : index
    %18 = vector.load %arg1[%c0_19, %c0_20, %c6] : memref<2x8x128xf32, #tpu.memory_space<vmem>>, vector<1x8x104xf32>
    %19 = vector.shape_cast %18 : vector<1x8x104xf32> to vector<8x104xf32>
    %c48 = arith.constant 48 : index
    %c0_21 = arith.constant 0 : index
    %20 = vector.load %arg9[%c48, %c0_21] : memref<200x256xf32, #tpu.memory_space<vmem>>, vector<8x104xf32>
    tpu.vector_store %arg9[%c48, %c0_21], %19 {strides = array<i32>} : memref<200x256xf32, #tpu.memory_space<vmem>>, vector<8x104xf32>,
    %c0_22 = arith.constant 0 : index
    %c0_23 = arith.constant 0 : index
    %c7 = arith.constant 7 : index
    %21 = vector.load %arg1[%c0_22, %c0_23, %c7] : memref<2x8x128xf32, #tpu.memory_space<vmem>>, vector<1x8x104xf32>
    %22 = vector.shape_cast %21 : vector<1x8x104xf32> to vector<8x104xf32>
    %c56 = arith.constant 56 : index
    %c0_24 = arith.constant 0 : index
    %23 = vector.load %arg9[%c56, %c0_24] : memref<200x256xf32, #tpu.memory_space<vmem>>, vector<8x104xf32>
    tpu.vector_store %arg9[%c56, %c0_24], %22 {strides = array<i32>} : memref<200x256xf32, #tpu.memory_space<vmem>>, vector<8x104xf32>,
    %c0_25 = arith.constant 0 : index
    %c0_26 = arith.constant 0 : index
    %c8_27 = arith.constant 8 : index
    %24 = vector.load %arg1[%c0_25, %c0_26, %c8_27] : memref<2x8x128xf32, #tpu.memory_space<vmem>>, vector<1x8x104xf32>
    %25 = vector.shape_cast %24 : vector<1x8x104xf32> to vector<8x104xf32>
    %c64 = arith.constant 64 : index
    %c0_28 = arith.constant 0 : index
    %26 = vector.load %arg9[%c64, %c0_28] : memref<200x256xf32, #tpu.memory_space<vmem>>, vector<8x104xf32>
    tpu.vector_store %arg9[%c64, %c0_28], %25 {strides = array<i32>} : memref<200x256xf32, #tpu.memory_space<vmem>>, vector<8x104xf32>,
    %c0_29 = arith.constant 0 : index
    %c0_30 = arith.constant 0 : index
    %c9 = arith.constant 9 : index
    %27 = vector.load %arg1[%c0_29, %c0_30, %c9] : memref<2x8x128xf32, #tpu.memory_space<vmem>>, vector<1x8x104xf32>
    %28 = vector.shape_cast %27 : vector<1x8x104xf32> to vector<8x104xf32>
    %c72 = arith.constant 72 : index
    %c0_31 = arith.constant 0 : index
    %29 = vector.load %arg9[%c72, %c0_31] : memref<200x256xf32, #tpu.memory_space<vmem>>, vector<8x104xf32>
    tpu.vector_store %arg9[%c72, %c0_31], %28 {strides = array<i32>} : memref<200x256xf32, #tpu.memory_space<vmem>>, vector<8x104xf32>,
    %c0_32 = arith.constant 0 : index
    %c0_33 = arith.constant 0 : index
    %c10 = arith.constant 10 : index
    %30 = vector.load %arg1[%c0_32, %c0_33, %c10] : memref<2x8x128xf32, #tpu.memory_space<vmem>>, vector<1x8x104xf32>
    %31 = vector.shape_cast %30 : vector<1x8x104xf32> to vector<8x104xf32>
    %c80 = arith.constant 80 : index
    %c0_34 = arith.constant 0 : index
    %32 = vector.load %arg9[%c80, %c0_34] : memref<200x256xf32, #tpu.memory_space<vmem>>, vector<8x104xf32>
    tpu.vector_store %arg9[%c80, %c0_34], %31 {strides = array<i32>} : memref<200x256xf32, #tpu.memory_space<vmem>>, vector<8x104xf32>,
    %c0_35 = arith.constant 0 : index
    %c0_36 = arith.constant 0 : index
    %c11 = arith.constant 11 : index
    %33 = vector.load %arg1[%c0_35, %c0_36, %c11] : memref<2x8x128xf32, #tpu.memory_space<vmem>>, vector<1x8x104xf32>
    %34 = vector.shape_cast %33 : vector<1x8x104xf32> to vector<8x104xf32>
    %c88 = arith.constant 88 : index
    %c0_37 = arith.constant 0 : index
    %35 = vector.load %arg9[%c88, %c0_37] : memref<200x256xf32, #tpu.memory_space<vmem>>, vector<8x104xf32>
    tpu.vector_store %arg9[%c88, %c0_37], %34 {strides = array<i32>} : memref<200x256xf32, #tpu.memory_space<vmem>>, vector<8x104xf32>,
    %c0_38 = arith.constant 0 : index
    %c0_39 = arith.constant 0 : index
    %c12 = arith.constant 12 : index
    %36 = vector.load %arg1[%c0_38, %c0_39, %c12] : memref<2x8x128xf32, #tpu.memory_space<vmem>>, vector<1x8x104xf32>
    %37 = vector.shape_cast %36 : vector<1x8x104xf32> to vector<8x104xf32>
    %c96 = arith.constant 96 : index
    %c0_40 = arith.constant 0 : index
    %38 = vector.load %arg9[%c96, %c0_40] : memref<200x256xf32, #tpu.memory_space<vmem>>, vector<8x104xf32>
    tpu.vector_store %arg9[%c96, %c0_40], %37 {strides = array<i32>} : memref<200x256xf32, #tpu.memory_space<vmem>>, vector<8x104xf32>,
    %c0_41 = arith.constant 0 : index
    %c0_42 = arith.constant 0 : index
    %c13 = arith.constant 13 : index
    %39 = vector.load %arg1[%c0_41, %c0_42, %c13] : memref<2x8x128xf32, #tpu.memory_space<vmem>>, vector<1x8x104xf32>
    %40 = vector.shape_cast %39 : vector<1x8x104xf32> to vector<8x104xf32>
    %c104 = arith.constant 104 : index
    %c0_43 = arith.constant 0 : index
    %41 = vector.load %arg9[%c104, %c0_43] : memref<200x256xf32, #tpu.memory_space<vmem>>, vector<8x104xf32>
    tpu.vector_store %arg9[%c104, %c0_43], %40 {strides = array<i32>} : memref<200x256xf32, #tpu.memory_space<vmem>>, vector<8x104xf32>,
    %c0_44 = arith.constant 0 : index
    %c0_45 = arith.constant 0 : index
    %c14 = arith.constant 14 : index
    %42 = vector.load %arg1[%c0_44, %c0_45, %c14] : memref<2x8x128xf32, #tpu.memory_space<vmem>>, vector<1x8x104xf32>
    %43 = vector.shape_cast %42 : vector<1x8x104xf32> to vector<8x104xf32>
    %c112 = arith.constant 112 : index
    %c0_46 = arith.constant 0 : index
    %44 = vector.load %arg9[%c112, %c0_46] : memref<200x256xf32, #tpu.memory_space<vmem>>, vector<8x104xf32>
    tpu.vector_store %arg9[%c112, %c0_46], %43 {strides = array<i32>} : memref<200x256xf32, #tpu.memory_space<vmem>>, vector<8x104xf32>,
    %c0_47 = arith.constant 0 : index
    %c0_48 = arith.constant 0 : index
    %c15 = arith.constant 15 : index
    %45 = vector.load %arg1[%c0_47, %c0_48, %c15] : memref<2x8x128xf32, #tpu.memory_space<vmem>>, vector<1x8x104xf32>
    %46 = vector.shape_cast %45 : vector<1x8x104xf32> to vector<8x104xf32>
    %c120 = arith.constant 120 : index
    %c0_49 = arith.constant 0 : index
    %47 = vector.load %arg9[%c120, %c0_49] : memref<200x256xf32, #tpu.memory_space<vmem>>, vector<8x104xf32>
    tpu.vector_store %arg9[%c120, %c0_49], %46 {strides = array<i32>} : memref<200x256xf32, #tpu.memory_space<vmem>>, vector<8x104xf32>,
    %c0_50 = arith.constant 0 : index
    %c0_51 = arith.constant 0 : index
    %c16_52 = arith.constant 16 : index
    %48 = vector.load %arg1[%c0_50, %c0_51, %c16_52] : memref<2x8x128xf32, #tpu.memory_space<vmem>>, vector<1x8x104xf32>
    %49 = vector.shape_cast %48 : vector<1x8x104xf32> to vector<8x104xf32>
    %c128 = arith.constant 128 : index
    %c0_53 = arith.constant 0 : index
    %50 = vector.load %arg9[%c128, %c0_53] : memref<200x256xf32, #tpu.memory_space<vmem>>, vector<8x104xf32>
    tpu.vector_store %arg9[%c128, %c0_53], %49 {strides = array<i32>} : memref<200x256xf32, #tpu.memory_space<vmem>>, vector<8x104xf32>,
    %c0_54 = arith.constant 0 : index
    %c0_55 = arith.constant 0 : index
    %c17 = arith.constant 17 : index
    %51 = vector.load %arg1[%c0_54, %c0_55, %c17] : memref<2x8x128xf32, #tpu.memory_space<vmem>>, vector<1x8x104xf32>
    %52 = vector.shape_cast %51 : vector<1x8x104xf32> to vector<8x104xf32>
    %c136 = arith.constant 136 : index
    %c0_56 = arith.constant 0 : index
    %53 = vector.load %arg9[%c136, %c0_56] : memref<200x256xf32, #tpu.memory_space<vmem>>, vector<8x104xf32>
    tpu.vector_store %arg9[%c136, %c0_56], %52 {strides = array<i32>} : memref<200x256xf32, #tpu.memory_space<vmem>>, vector<8x104xf32>,
    %c0_57 = arith.constant 0 : index
    %c0_58 = arith.constant 0 : index
    %c18 = arith.constant 18 : index
    %54 = vector.load %arg1[%c0_57, %c0_58, %c18] : memref<2x8x128xf32, #tpu.memory_space<vmem>>, vector<1x8x104xf32>
    %55 = vector.shape_cast %54 : vector<1x8x104xf32> to vector<8x104xf32>
    %c144 = arith.constant 144 : index
    %c0_59 = arith.constant 0 : index
    %56 = vector.load %arg9[%c144, %c0_59] : memref<200x256xf32, #tpu.memory_space<vmem>>, vector<8x104xf32>
    tpu.vector_store %arg9[%c144, %c0_59], %55 {strides = array<i32>} : memref<200x256xf32, #tpu.memory_space<vmem>>, vector<8x104xf32>,
    %c0_60 = arith.constant 0 : index
    %c0_61 = arith.constant 0 : index
    %c19 = arith.constant 19 : index
    %57 = vector.load %arg1[%c0_60, %c0_61, %c19] : memref<2x8x128xf32, #tpu.memory_space<vmem>>, vector<1x8x104xf32>
    %58 = vector.shape_cast %57 : vector<1x8x104xf32> to vector<8x104xf32>
    %c152 = arith.constant 152 : index
    %c0_62 = arith.constant 0 : index
    %59 = vector.load %arg9[%c152, %c0_62] : memref<200x256xf32, #tpu.memory_space<vmem>>, vector<8x104xf32>
    tpu.vector_store %arg9[%c152, %c0_62], %58 {strides = array<i32>} : memref<200x256xf32, #tpu.memory_space<vmem>>, vector<8x104xf32>,
    %c0_63 = arith.constant 0 : index
    %c0_64 = arith.constant 0 : index
    %c20 = arith.constant 20 : index
    %60 = vector.load %arg1[%c0_63, %c0_64, %c20] : memref<2x8x128xf32, #tpu.memory_space<vmem>>, vector<1x8x104xf32>
    %61 = vector.shape_cast %60 : vector<1x8x104xf32> to vector<8x104xf32>
    %c160 = arith.constant 160 : index
    %c0_65 = arith.constant 0 : index
    %62 = vector.load %arg9[%c160, %c0_65] : memref<200x256xf32, #tpu.memory_space<vmem>>, vector<8x104xf32>
    tpu.vector_store %arg9[%c160, %c0_65], %61 {strides = array<i32>} : memref<200x256xf32, #tpu.memory_space<vmem>>, vector<8x104xf32>,
    %c0_66 = arith.constant 0 : index
    %c0_67 = arith.constant 0 : index
    %c21 = arith.constant 21 : index
    %63 = vector.load %arg1[%c0_66, %c0_67, %c21] : memref<2x8x128xf32, #tpu.memory_space<vmem>>, vector<1x8x104xf32>
    %64 = vector.shape_cast %63 : vector<1x8x104xf32> to vector<8x104xf32>
    %c168 = arith.constant 168 : index
    %c0_68 = arith.constant 0 : index
    %65 = vector.load %arg9[%c168, %c0_68] : memref<200x256xf32, #tpu.memory_space<vmem>>, vector<8x104xf32>
    tpu.vector_store %arg9[%c168, %c0_68], %64 {strides = array<i32>} : memref<200x256xf32, #tpu.memory_space<vmem>>, vector<8x104xf32>,
    %c0_69 = arith.constant 0 : index
    %c0_70 = arith.constant 0 : index
    %c22 = arith.constant 22 : index
    %66 = vector.load %arg1[%c0_69, %c0_70, %c22] : memref<2x8x128xf32, #tpu.memory_space<vmem>>, vector<1x8x104xf32>
    %67 = vector.shape_cast %66 : vector<1x8x104xf32> to vector<8x104xf32>
    %c176 = arith.constant 176 : index
    %c0_71 = arith.constant 0 : index
    %68 = vector.load %arg9[%c176, %c0_71] : memref<200x256xf32, #tpu.memory_space<vmem>>, vector<8x104xf32>
    tpu.vector_store %arg9[%c176, %c0_71], %67 {strides = array<i32>} : memref<200x256xf32, #tpu.memory_space<vmem>>, vector<8x104xf32>,
    %c0_72 = arith.constant 0 : index
    %c0_73 = arith.constant 0 : index
    %c23 = arith.constant 23 : index
    %69 = vector.load %arg1[%c0_72, %c0_73, %c23] : memref<2x8x128xf32, #tpu.memory_space<vmem>>, vector<1x8x104xf32>
    %70 = vector.shape_cast %69 : vector<1x8x104xf32> to vector<8x104xf32>
    %c184 = arith.constant 184 : index
    %c0_74 = arith.constant 0 : index
    %71 = vector.load %arg9[%c184, %c0_74] : memref<200x256xf32, #tpu.memory_space<vmem>>, vector<8x104xf32>
    tpu.vector_store %arg9[%c184, %c0_74], %70 {strides = array<i32>} : memref<200x256xf32, #tpu.memory_space<vmem>>, vector<8x104xf32>,
    %c0_75 = arith.constant 0 : index
    %c0_76 = arith.constant 0 : index
    %c24_77 = arith.constant 24 : index
    %72 = vector.load %arg1[%c0_75, %c0_76, %c24_77] : memref<2x8x128xf32, #tpu.memory_space<vmem>>, vector<1x8x104xf32>
    %73 = vector.shape_cast %72 : vector<1x8x104xf32> to vector<8x104xf32>
    %c192 = arith.constant 192 : index
    %c0_78 = arith.constant 0 : index
    %74 = vector.load %arg9[%c192, %c0_78] : memref<200x256xf32, #tpu.memory_space<vmem>>, vector<8x104xf32>
    tpu.vector_store %arg9[%c192, %c0_78], %73 {strides = array<i32>} : memref<200x256xf32, #tpu.memory_space<vmem>>, vector<8x104xf32>,
    %c1_79 = arith.constant 1 : index
    %c0_80 = arith.constant 0 : index
    %c0_81 = arith.constant 0 : index
    %75 = vector.load %arg1[%c1_79, %c0_80, %c0_81] : memref<2x8x128xf32, #tpu.memory_space<vmem>>, vector<1x8x104xf32>
    %76 = vector.shape_cast %75 : vector<1x8x104xf32> to vector<8x104xf32>
    %c0_82 = arith.constant 0 : index
    %c128_83 = arith.constant 128 : index
    %77 = vector.load %arg9[%c0_82, %c128_83] : memref<200x256xf32, #tpu.memory_space<vmem>>, vector<8x104xf32>
    tpu.vector_store %arg9[%c0_82, %c128_83], %76 {strides = array<i32>} : memref<200x256xf32, #tpu.memory_space<vmem>>, vector<8x104xf32>,
    %c1_84 = arith.constant 1 : index
    %c0_85 = arith.constant 0 : index
    %c1_86 = arith.constant 1 : index
    %78 = vector.load %arg1[%c1_84, %c0_85, %c1_86] : memref<2x8x128xf32, #tpu.memory_space<vmem>>, vector<1x8x104xf32>
    %79 = vector.shape_cast %78 : vector<1x8x104xf32> to vector<8x104xf32>
    %c8_87 = arith.constant 8 : index
    %c128_88 = arith.constant 128 : index
    %80 = vector.load %arg9[%c8_87, %c128_88] : memref<200x256xf32, #tpu.memory_space<vmem>>, vector<8x104xf32>
    tpu.vector_store %arg9[%c8_87, %c128_88], %79 {strides = array<i32>} : memref<200x256xf32, #tpu.memory_space<vmem>>, vector<8x104xf32>,
    %c1_89 = arith.constant 1 : index
    %c0_90 = arith.constant 0 : index
    %c2_91 = arith.constant 2 : index
    %81 = vector.load %arg1[%c1_89, %c0_90, %c2_91] : memref<2x8x128xf32, #tpu.memory_space<vmem>>, vector<1x8x104xf32>
    %82 = vector.shape_cast %81 : vector<1x8x104xf32> to vector<8x104xf32>
    %c16_92 = arith.constant 16 : index
    %c128_93 = arith.constant 128 : index
    %83 = vector.load %arg9[%c16_92, %c128_93] : memref<200x256xf32, #tpu.memory_space<vmem>>, vector<8x104xf32>
    tpu.vector_store %arg9[%c16_92, %c128_93], %82 {strides = array<i32>} : memref<200x256xf32, #tpu.memory_space<vmem>>, vector<8x104xf32>,
    %c1_94 = arith.constant 1 : index
    %c0_95 = arith.constant 0 : index
    %c3_96 = arith.constant 3 : index
    %84 = vector.load %arg1[%c1_94, %c0_95, %c3_96] : memref<2x8x128xf32, #tpu.memory_space<vmem>>, vector<1x8x104xf32>
    %85 = vector.shape_cast %84 : vector<1x8x104xf32> to vector<8x104xf32>
    %c24_97 = arith.constant 24 : index
    %c128_98 = arith.constant 128 : index
    %86 = vector.load %arg9[%c24_97, %c128_98] : memref<200x256xf32, #tpu.memory_space<vmem>>, vector<8x104xf32>
    tpu.vector_store %arg9[%c24_97, %c128_98], %85 {strides = array<i32>} : memref<200x256xf32, #tpu.memory_space<vmem>>, vector<8x104xf32>,
    %c1_99 = arith.constant 1 : index
    %c0_100 = arith.constant 0 : index
    %c4_101 = arith.constant 4 : index
    %87 = vector.load %arg1[%c1_99, %c0_100, %c4_101] : memref<2x8x128xf32, #tpu.memory_space<vmem>>, vector<1x8x104xf32>
    %88 = vector.shape_cast %87 : vector<1x8x104xf32> to vector<8x104xf32>
    %c32_102 = arith.constant 32 : index
    %c128_103 = arith.constant 128 : index
    %89 = vector.load %arg9[%c32_102, %c128_103] : memref<200x256xf32, #tpu.memory_space<vmem>>, vector<8x104xf32>
    tpu.vector_store %arg9[%c32_102, %c128_103], %88 {strides = array<i32>} : memref<200x256xf32, #tpu.memory_space<vmem>>, vector<8x104xf32>,
    %c1_104 = arith.constant 1 : index
    %c0_105 = arith.constant 0 : index
    %c5_106 = arith.constant 5 : index
    %90 = vector.load %arg1[%c1_104, %c0_105, %c5_106] : memref<2x8x128xf32, #tpu.memory_space<vmem>>, vector<1x8x104xf32>
    %91 = vector.shape_cast %90 : vector<1x8x104xf32> to vector<8x104xf32>
    %c40_107 = arith.constant 40 : index
    %c128_108 = arith.constant 128 : index
    %92 = vector.load %arg9[%c40_107, %c128_108] : memref<200x256xf32, #tpu.memory_space<vmem>>, vector<8x104xf32>
    tpu.vector_store %arg9[%c40_107, %c128_108], %91 {strides = array<i32>} : memref<200x256xf32, #tpu.memory_space<vmem>>, vector<8x104xf32>,
    %c1_109 = arith.constant 1 : index
    %c0_110 = arith.constant 0 : index
    %c6_111 = arith.constant 6 : index
    %93 = vector.load %arg1[%c1_109, %c0_110, %c6_111] : memref<2x8x128xf32, #tpu.memory_space<vmem>>, vector<1x8x104xf32>
    %94 = vector.shape_cast %93 : vector<1x8x104xf32> to vector<8x104xf32>
    %c48_112 = arith.constant 48 : index
    %c128_113 = arith.constant 128 : index
    %95 = vector.load %arg9[%c48_112, %c128_113] : memref<200x256xf32, #tpu.memory_space<vmem>>, vector<8x104xf32>
    tpu.vector_store %arg9[%c48_112, %c128_113], %94 {strides = array<i32>} : memref<200x256xf32, #tpu.memory_space<vmem>>, vector<8x104xf32>,
    %c1_114 = arith.constant 1 : index
    %c0_115 = arith.constant 0 : index
    %c7_116 = arith.constant 7 : index
    %96 = vector.load %arg1[%c1_114, %c0_115, %c7_116] : memref<2x8x128xf32, #tpu.memory_space<vmem>>, vector<1x8x104xf32>
    %97 = vector.shape_cast %96 : vector<1x8x104xf32> to vector<8x104xf32>
    %c56_117 = arith.constant 56 : index
    %c128_118 = arith.constant 128 : index
    %98 = vector.load %arg9[%c56_117, %c128_118] : memref<200x256xf32, #tpu.memory_space<vmem>>, vector<8x104xf32>
    tpu.vector_store %arg9[%c56_117, %c128_118], %97 {strides = array<i32>} : memref<200x256xf32, #tpu.memory_space<vmem>>, vector<8x104xf32>,
    %c1_119 = arith.constant 1 : index
    %c0_120 = arith.constant 0 : index
    %c8_121 = arith.constant 8 : index
    %99 = vector.load %arg1[%c1_119, %c0_120, %c8_121] : memref<2x8x128xf32, #tpu.memory_space<vmem>>, vector<1x8x104xf32>
    %100 = vector.shape_cast %99 : vector<1x8x104xf32> to vector<8x104xf32>
    %c64_122 = arith.constant 64 : index
    %c128_123 = arith.constant 128 : index
    %101 = vector.load %arg9[%c64_122, %c128_123] : memref<200x256xf32, #tpu.memory_space<vmem>>, vector<8x104xf32>
    tpu.vector_store %arg9[%c64_122, %c128_123], %100 {strides = array<i32>} : memref<200x256xf32, #tpu.memory_space<vmem>>, vector<8x104xf32>,
    %c1_124 = arith.constant 1 : index
    %c0_125 = arith.constant 0 : index
    %c9_126 = arith.constant 9 : index
    %102 = vector.load %arg1[%c1_124, %c0_125, %c9_126] : memref<2x8x128xf32, #tpu.memory_space<vmem>>, vector<1x8x104xf32>
    %103 = vector.shape_cast %102 : vector<1x8x104xf32> to vector<8x104xf32>
    %c72_127 = arith.constant 72 : index
    %c128_128 = arith.constant 128 : index
    %104 = vector.load %arg9[%c72_127, %c128_128] : memref<200x256xf32, #tpu.memory_space<vmem>>, vector<8x104xf32>
    tpu.vector_store %arg9[%c72_127, %c128_128], %103 {strides = array<i32>} : memref<200x256xf32, #tpu.memory_space<vmem>>, vector<8x104xf32>,
    %c1_129 = arith.constant 1 : index
    %c0_130 = arith.constant 0 : index
    %c10_131 = arith.constant 10 : index
    %105 = vector.load %arg1[%c1_129, %c0_130, %c10_131] : memref<2x8x128xf32, #tpu.memory_space<vmem>>, vector<1x8x104xf32>
    %106 = vector.shape_cast %105 : vector<1x8x104xf32> to vector<8x104xf32>
    %c80_132 = arith.constant 80 : index
    %c128_133 = arith.constant 128 : index
    %107 = vector.load %arg9[%c80_132, %c128_133] : memref<200x256xf32, #tpu.memory_space<vmem>>, vector<8x104xf32>
    tpu.vector_store %arg9[%c80_132, %c128_133], %106 {strides = array<i32>} : memref<200x256xf32, #tpu.memory_space<vmem>>, vector<8x104xf32>,
    %c1_134 = arith.constant 1 : index
    %c0_135 = arith.constant 0 : index
    %c11_136 = arith.constant 11 : index
    %108 = vector.load %arg1[%c1_134, %c0_135, %c11_136] : memref<2x8x128xf32, #tpu.memory_space<vmem>>, vector<1x8x104xf32>
    %109 = vector.shape_cast %108 : vector<1x8x104xf32> to vector<8x104xf32>
    %c88_137 = arith.constant 88 : index
    %c128_138 = arith.constant 128 : index
    %110 = vector.load %arg9[%c88_137, %c128_138] : memref<200x256xf32, #tpu.memory_space<vmem>>, vector<8x104xf32>
    tpu.vector_store %arg9[%c88_137, %c128_138], %109 {strides = array<i32>} : memref<200x256xf32, #tpu.memory_space<vmem>>, vector<8x104xf32>,
    %c1_139 = arith.constant 1 : index
    %c0_140 = arith.constant 0 : index
    %c12_141 = arith.constant 12 : index
    %111 = vector.load %arg1[%c1_139, %c0_140, %c12_141] : memref<2x8x128xf32, #tpu.memory_space<vmem>>, vector<1x8x104xf32>
    %112 = vector.shape_cast %111 : vector<1x8x104xf32> to vector<8x104xf32>
    %c96_142 = arith.constant 96 : index
    %c128_143 = arith.constant 128 : index
    %113 = vector.load %arg9[%c96_142, %c128_143] : memref<200x256xf32, #tpu.memory_space<vmem>>, vector<8x104xf32>
    tpu.vector_store %arg9[%c96_142, %c128_143], %112 {strides = array<i32>} : memref<200x256xf32, #tpu.memory_space<vmem>>, vector<8x104xf32>,
    %c1_144 = arith.constant 1 : index
    %c0_145 = arith.constant 0 : index
    %c13_146 = arith.constant 13 : index
    %114 = vector.load %arg1[%c1_144, %c0_145, %c13_146] : memref<2x8x128xf32, #tpu.memory_space<vmem>>, vector<1x8x104xf32>
    %115 = vector.shape_cast %114 : vector<1x8x104xf32> to vector<8x104xf32>
    %c104_147 = arith.constant 104 : index
    %c128_148 = arith.constant 128 : index
    %116 = vector.load %arg9[%c104_147, %c128_148] : memref<200x256xf32, #tpu.memory_space<vmem>>, vector<8x104xf32>
    tpu.vector_store %arg9[%c104_147, %c128_148], %115 {strides = array<i32>} : memref<200x256xf32, #tpu.memory_space<vmem>>, vector<8x104xf32>,
    %c1_149 = arith.constant 1 : index
    %c0_150 = arith.constant 0 : index
    %c14_151 = arith.constant 14 : index
    %117 = vector.load %arg1[%c1_149, %c0_150, %c14_151] : memref<2x8x128xf32, #tpu.memory_space<vmem>>, vector<1x8x104xf32>
    %118 = vector.shape_cast %117 : vector<1x8x104xf32> to vector<8x104xf32>
    %c112_152 = arith.constant 112 : index
    %c128_153 = arith.constant 128 : index
    %119 = vector.load %arg9[%c112_152, %c128_153] : memref<200x256xf32, #tpu.memory_space<vmem>>, vector<8x104xf32>
    tpu.vector_store %arg9[%c112_152, %c128_153], %118 {strides = array<i32>} : memref<200x256xf32, #tpu.memory_space<vmem>>, vector<8x104xf32>,
    %c1_154 = arith.constant 1 : index
    %c0_155 = arith.constant 0 : index
    %c15_156 = arith.constant 15 : index
    %120 = vector.load %arg1[%c1_154, %c0_155, %c15_156] : memref<2x8x128xf32, #tpu.memory_space<vmem>>, vector<1x8x104xf32>
    %121 = vector.shape_cast %120 : vector<1x8x104xf32> to vector<8x104xf32>
    %c120_157 = arith.constant 120 : index
    %c128_158 = arith.constant 128 : index
    %122 = vector.load %arg9[%c120_157, %c128_158] : memref<200x256xf32, #tpu.memory_space<vmem>>, vector<8x104xf32>
    tpu.vector_store %arg9[%c120_157, %c128_158], %121 {strides = array<i32>} : memref<200x256xf32, #tpu.memory_space<vmem>>, vector<8x104xf32>,
    %c1_159 = arith.constant 1 : index
    %c0_160 = arith.constant 0 : index
    %c16_161 = arith.constant 16 : index
    %123 = vector.load %arg1[%c1_159, %c0_160, %c16_161] : memref<2x8x128xf32, #tpu.memory_space<vmem>>, vector<1x8x104xf32>
    %124 = vector.shape_cast %123 : vector<1x8x104xf32> to vector<8x104xf32>
    %c128_162 = arith.constant 128 : index
    %c128_163 = arith.constant 128 : index
    %125 = vector.load %arg9[%c128_162, %c128_163] : memref<200x256xf32, #tpu.memory_space<vmem>>, vector<8x104xf32>
    tpu.vector_store %arg9[%c128_162, %c128_163], %124 {strides = array<i32>} : memref<200x256xf32, #tpu.memory_space<vmem>>, vector<8x104xf32>,
    %c1_164 = arith.constant 1 : index
    %c0_165 = arith.constant 0 : index
    %c17_166 = arith.constant 17 : index
    %126 = vector.load %arg1[%c1_164, %c0_165, %c17_166] : memref<2x8x128xf32, #tpu.memory_space<vmem>>, vector<1x8x104xf32>
    %127 = vector.shape_cast %126 : vector<1x8x104xf32> to vector<8x104xf32>
    %c136_167 = arith.constant 136 : index
    %c128_168 = arith.constant 128 : index
    %128 = vector.load %arg9[%c136_167, %c128_168] : memref<200x256xf32, #tpu.memory_space<vmem>>, vector<8x104xf32>
    tpu.vector_store %arg9[%c136_167, %c128_168], %127 {strides = array<i32>} : memref<200x256xf32, #tpu.memory_space<vmem>>, vector<8x104xf32>,
    %c1_169 = arith.constant 1 : index
    %c0_170 = arith.constant 0 : index
    %c18_171 = arith.constant 18 : index
    %129 = vector.load %arg1[%c1_169, %c0_170, %c18_171] : memref<2x8x128xf32, #tpu.memory_space<vmem>>, vector<1x8x104xf32>
    %130 = vector.shape_cast %129 : vector<1x8x104xf32> to vector<8x104xf32>
    %c144_172 = arith.constant 144 : index
    %c128_173 = arith.constant 128 : index
    %131 = vector.load %arg9[%c144_172, %c128_173] : memref<200x256xf32, #tpu.memory_space<vmem>>, vector<8x104xf32>
    tpu.vector_store %arg9[%c144_172, %c128_173], %130 {strides = array<i32>} : memref<200x256xf32, #tpu.memory_space<vmem>>, vector<8x104xf32>,
    %c1_174 = arith.constant 1 : index
    %c0_175 = arith.constant 0 : index
    %c19_176 = arith.constant 19 : index
    %132 = vector.load %arg1[%c1_174, %c0_175, %c19_176] : memref<2x8x128xf32, #tpu.memory_space<vmem>>, vector<1x8x104xf32>
    %133 = vector.shape_cast %132 : vector<1x8x104xf32> to vector<8x104xf32>
    %c152_177 = arith.constant 152 : index
    %c128_178 = arith.constant 128 : index
    %134 = vector.load %arg9[%c152_177, %c128_178] : memref<200x256xf32, #tpu.memory_space<vmem>>, vector<8x104xf32>
    tpu.vector_store %arg9[%c152_177, %c128_178], %133 {strides = array<i32>} : memref<200x256xf32, #tpu.memory_space<vmem>>, vector<8x104xf32>,
    %c1_179 = arith.constant 1 : index
    %c0_180 = arith.constant 0 : index
    %c20_181 = arith.constant 20 : index
    %135 = vector.load %arg1[%c1_179, %c0_180, %c20_181] : memref<2x8x128xf32, #tpu.memory_space<vmem>>, vector<1x8x104xf32>
    %136 = vector.shape_cast %135 : vector<1x8x104xf32> to vector<8x104xf32>
    %c160_182 = arith.constant 160 : index
    %c128_183 = arith.constant 128 : index
    %137 = vector.load %arg9[%c160_182, %c128_183] : memref<200x256xf32, #tpu.memory_space<vmem>>, vector<8x104xf32>
    tpu.vector_store %arg9[%c160_182, %c128_183], %136 {strides = array<i32>} : memref<200x256xf32, #tpu.memory_space<vmem>>, vector<8x104xf32>,
    %c1_184 = arith.constant 1 : index
    %c0_185 = arith.constant 0 : index
    %c21_186 = arith.constant 21 : index
    %138 = vector.load %arg1[%c1_184, %c0_185, %c21_186] : memref<2x8x128xf32, #tpu.memory_space<vmem>>, vector<1x8x104xf32>
    %139 = vector.shape_cast %138 : vector<1x8x104xf32> to vector<8x104xf32>
    %c168_187 = arith.constant 168 : index
    %c128_188 = arith.constant 128 : index
    %140 = vector.load %arg9[%c168_187, %c128_188] : memref<200x256xf32, #tpu.memory_space<vmem>>, vector<8x104xf32>
    tpu.vector_store %arg9[%c168_187, %c128_188], %139 {strides = array<i32>} : memref<200x256xf32, #tpu.memory_space<vmem>>, vector<8x104xf32>,
    %c1_189 = arith.constant 1 : index
    %c0_190 = arith.constant 0 : index
    %c22_191 = arith.constant 22 : index
    %141 = vector.load %arg1[%c1_189, %c0_190, %c22_191] : memref<2x8x128xf32, #tpu.memory_space<vmem>>, vector<1x8x104xf32>
    %142 = vector.shape_cast %141 : vector<1x8x104xf32> to vector<8x104xf32>
    %c176_192 = arith.constant 176 : index
    %c128_193 = arith.constant 128 : index
    %143 = vector.load %arg9[%c176_192, %c128_193] : memref<200x256xf32, #tpu.memory_space<vmem>>, vector<8x104xf32>
    tpu.vector_store %arg9[%c176_192, %c128_193], %142 {strides = array<i32>} : memref<200x256xf32, #tpu.memory_space<vmem>>, vector<8x104xf32>,
    %c1_194 = arith.constant 1 : index
    %c0_195 = arith.constant 0 : index
    %c23_196 = arith.constant 23 : index
    %144 = vector.load %arg1[%c1_194, %c0_195, %c23_196] : memref<2x8x128xf32, #tpu.memory_space<vmem>>, vector<1x8x104xf32>
    %145 = vector.shape_cast %144 : vector<1x8x104xf32> to vector<8x104xf32>
    %c184_197 = arith.constant 184 : index
    %c128_198 = arith.constant 128 : index
    %146 = vector.load %arg9[%c184_197, %c128_198] : memref<200x256xf32, #tpu.memory_space<vmem>>, vector<8x104xf32>
    tpu.vector_store %arg9[%c184_197, %c128_198], %145 {strides = array<i32>} : memref<200x256xf32, #tpu.memory_space<vmem>>, vector<8x104xf32>,
    %c1_199 = arith.constant 1 : index
    %c0_200 = arith.constant 0 : index
    %c24_201 = arith.constant 24 : index
    %147 = vector.load %arg1[%c1_199, %c0_200, %c24_201] : memref<2x8x128xf32, #tpu.memory_space<vmem>>, vector<1x8x104xf32>
    %148 = vector.shape_cast %147 : vector<1x8x104xf32> to vector<8x104xf32>
    %c192_202 = arith.constant 192 : index
    %c128_203 = arith.constant 128 : index
    %149 = vector.load %arg9[%c192_202, %c128_203] : memref<200x256xf32, #tpu.memory_space<vmem>>, vector<8x104xf32>
    tpu.vector_store %arg9[%c192_202, %c128_203], %148 {strides = array<i32>} : memref<200x256xf32, #tpu.memory_space<vmem>>, vector<8x104xf32>,
    %c0_204 = arith.constant 0 : index
    %c0_205 = arith.constant 0 : index
    %150 = vector.load %arg2[%c0_204, %c0_205] : memref<40x200xf32, #tpu.memory_space<vmem>>, vector<40x200xf32>
    %c0_206 = arith.constant 0 : index
    %c0_207 = arith.constant 0 : index
    %151 = vector.load %arg3[%c0_206, %c0_207] : memref<40x1xf32, #tpu.memory_space<vmem>>, vector<40x1xf32>
    %c0_208 = arith.constant 0 : index
    %c0_209 = arith.constant 0 : index
    %152 = vector.load %arg4[%c0_208, %c0_209] : memref<104x2xf32, #tpu.memory_space<vmem>>, vector<104x2xf32>
    %c0_210 = arith.constant 0 : index
    %c0_211 = arith.constant 0 : index
    %153 = vector.load %arg9[%c0_210, %c0_211] : memref<200x256xf32, #tpu.memory_space<vmem>>, vector<200x104xf32>
    %cst = arith.constant dense<0.000000e+00> : vector<40x104xf32>
    %154 = tpu.matmul %150, %153, %cst {dimension_numbers = #tpu.dot_dimension_numbers<[1], [0], [0], [1], [0, 0, 1, 1], [], []>} : vector<40x200xf32>, vector<200x104xf32>, vector<40x104xf32> -> vector<40x104xf32>
    %155 = vector.broadcast %151 : vector<40x1xf32> to vector<40x104xf32>
    %156 = arith.addf %154, %155 : vector<40x104xf32>
    %157 = arith.mulf %156, %156 : vector<40x104xf32>
    %cst_212 = arith.constant dense<0.000000e+00> : vector<40x2xf32>
    %158 = tpu.matmul %157, %152, %cst_212 {dimension_numbers = #tpu.dot_dimension_numbers<[1], [0], [0], [1], [0, 0, 1, 1], [], []>} : vector<40x104xf32>, vector<104x2xf32>, vector<40x2xf32> -> vector<40x2xf32>
    %cst_213 = arith.constant 9.99999997E-7 : f32
    %159 = vector.broadcast %cst_213 : f32 to vector<40x2xf32>
    %160 = arith.maximumf %158, %159 : vector<40x2xf32>
    %161 = math.log %160 : vector<40x2xf32>
    %c0_214 = arith.constant 0 : index
    %c0_215 = arith.constant 0 : index
    %c0_216 = arith.constant 0 : index
    %162 = vector.load %arg5[%c0_214, %c0_215, %c0_216] : memref<2x40x2xf32, #tpu.memory_space<vmem>>, vector<1x40x2xf32>
    %163 = vector.shape_cast %162 : vector<1x40x2xf32> to vector<40x2xf32>
    %164 = arith.mulf %163, %161 : vector<40x2xf32>
    %cst_217 = arith.constant dense<0.000000e+00> : vector<40xf32>
    %165 = vector.multi_reduction <add>, %164, %cst_217 [1] : vector<40x2xf32> to vector<40xf32>
    %166 = vector.shape_cast %165 : vector<40xf32> to vector<40x1xf32>
    %cst_218 = arith.constant dense<0.000000e+00> : vector<1xf32>
    %167 = vector.multi_reduction <add>, %166, %cst_218 [0] : vector<40x1xf32> to vector<1xf32>
    %168 = vector.shape_cast %167 : vector<1xf32> to vector<1x1xf32>
    %c1_219 = arith.constant 1 : index
    %c0_220 = arith.constant 0 : index
    %c0_221 = arith.constant 0 : index
    %169 = vector.load %arg5[%c1_219, %c0_220, %c0_221] : memref<2x40x2xf32, #tpu.memory_space<vmem>>, vector<1x40x2xf32>
    %170 = vector.shape_cast %169 : vector<1x40x2xf32> to vector<40x2xf32>
    %171 = arith.mulf %170, %161 : vector<40x2xf32>
    %cst_222 = arith.constant dense<0.000000e+00> : vector<40xf32>
    %172 = vector.multi_reduction <add>, %171, %cst_222 [1] : vector<40x2xf32> to vector<40xf32>
    %173 = vector.shape_cast %172 : vector<40xf32> to vector<40x1xf32>
    %cst_223 = arith.constant dense<0.000000e+00> : vector<1xf32>
    %174 = vector.multi_reduction <add>, %173, %cst_223 [0] : vector<40x1xf32> to vector<1xf32>
    %175 = vector.shape_cast %174 : vector<1xf32> to vector<1x1xf32>
    %176 = tpu.concatenate %168, %175 in 0 : vector<1x1xf32>, vector<1x1xf32> -> vector<2x1xf32>
    %c0_224 = arith.constant 0 : index
    %c128_225 = arith.constant 128 : index
    %177 = vector.load %arg9[%c0_224, %c128_225] : memref<200x256xf32, #tpu.memory_space<vmem>>, vector<200x104xf32>
    %cst_226 = arith.constant dense<0.000000e+00> : vector<40x104xf32>
    %178 = tpu.matmul %150, %177, %cst_226 {dimension_numbers = #tpu.dot_dimension_numbers<[1], [0], [0], [1], [0, 0, 1, 1], [], []>} : vector<40x200xf32>, vector<200x104xf32>, vector<40x104xf32> -> vector<40x104xf32>
    %179 = vector.broadcast %151 : vector<40x1xf32> to vector<40x104xf32>
    %180 = arith.addf %178, %179 : vector<40x104xf32>
    %181 = arith.mulf %180, %180 : vector<40x104xf32>
    %cst_227 = arith.constant dense<0.000000e+00> : vector<40x2xf32>
    %182 = tpu.matmul %181, %152, %cst_227 {dimension_numbers = #tpu.dot_dimension_numbers<[1], [0], [0], [1], [0, 0, 1, 1], [], []>} : vector<40x104xf32>, vector<104x2xf32>, vector<40x2xf32> -> vector<40x2xf32>
    %cst_228 = arith.constant 9.99999997E-7 : f32
    %183 = vector.broadcast %cst_228 : f32 to vector<40x2xf32>
    %184 = arith.maximumf %182, %183 : vector<40x2xf32>
    %185 = math.log %184 : vector<40x2xf32>
    %c0_229 = arith.constant 0 : index
    %c0_230 = arith.constant 0 : index
    %c0_231 = arith.constant 0 : index
    %186 = vector.load %arg5[%c0_229, %c0_230, %c0_231] : memref<2x40x2xf32, #tpu.memory_space<vmem>>, vector<1x40x2xf32>
    %187 = vector.shape_cast %186 : vector<1x40x2xf32> to vector<40x2xf32>
    %188 = arith.mulf %187, %185 : vector<40x2xf32>
    %cst_232 = arith.constant dense<0.000000e+00> : vector<40xf32>
    %189 = vector.multi_reduction <add>, %188, %cst_232 [1] : vector<40x2xf32> to vector<40xf32>
    %190 = vector.shape_cast %189 : vector<40xf32> to vector<40x1xf32>
    %cst_233 = arith.constant dense<0.000000e+00> : vector<1xf32>
    %191 = vector.multi_reduction <add>, %190, %cst_233 [0] : vector<40x1xf32> to vector<1xf32>
    %192 = vector.shape_cast %191 : vector<1xf32> to vector<1x1xf32>
    %c1_234 = arith.constant 1 : index
    %c0_235 = arith.constant 0 : index
    %c0_236 = arith.constant 0 : index
    %193 = vector.load %arg5[%c1_234, %c0_235, %c0_236] : memref<2x40x2xf32, #tpu.memory_space<vmem>>, vector<1x40x2xf32>
    %194 = vector.shape_cast %193 : vector<1x40x2xf32> to vector<40x2xf32>
    %195 = arith.mulf %194, %185 : vector<40x2xf32>
    %cst_237 = arith.constant dense<0.000000e+00> : vector<40xf32>
    %196 = vector.multi_reduction <add>, %195, %cst_237 [1] : vector<40x2xf32> to vector<40xf32>
    %197 = vector.shape_cast %196 : vector<40xf32> to vector<40x1xf32>
    %cst_238 = arith.constant dense<0.000000e+00> : vector<1xf32>
    %198 = vector.multi_reduction <add>, %197, %cst_238 [0] : vector<40x1xf32> to vector<1xf32>
    %199 = vector.shape_cast %198 : vector<1xf32> to vector<1x1xf32>
    %200 = tpu.concatenate %192, %199 in 0 : vector<1x1xf32>, vector<1x1xf32> -> vector<2x1xf32>
    %201 = tpu.concatenate %161, %185 in 1 : vector<40x2xf32>, vector<40x2xf32> -> vector<40x4xf32>
    %c0_239 = arith.constant 0 : index
    %c0_240 = arith.constant 0 : index
    %c0_241 = arith.constant 0 : index
    %202 = vector.load %arg8[%c0_239, %c0_240, %c0_241] : memref<1x40x4xf32, #tpu.memory_space<vmem>>, vector<1x40x4xf32>
    %203 = vector.shape_cast %202 : vector<1x40x4xf32> to vector<40x4xf32>
    %204 = vector.shape_cast %201 : vector<40x4xf32> to vector<1x40x4xf32>
    tpu.vector_store %arg8[%c0_239, %c0_240, %c0_241], %204 {strides = array<i32>} : memref<1x40x4xf32, #tpu.memory_space<vmem>>, vector<1x40x4xf32>,
    %205 = tpu.concatenate %176, %200 in 1 : vector<2x1xf32>, vector<2x1xf32> -> vector<2x2xf32>
    %c0_242 = arith.constant 0 : index
    %c0_243 = arith.constant 0 : index
    %206 = vector.load %arg6[%c0_242, %c0_243] : memref<2x1xf32, #tpu.memory_space<vmem>>, vector<2x1xf32>
    %207 = vector.broadcast %206 : vector<2x1xf32> to vector<2x2xf32>
    %208 = arith.addf %205, %207 : vector<2x2xf32>
    %cst_244 = arith.constant dense<0xFF800000> : vector<2xf32>
    %209 = vector.multi_reduction <maximumf>, %208, %cst_244 [0] : vector<2x2xf32> to vector<2xf32>
    %210 = vector.shape_cast %209 : vector<2xf32> to vector<1x2xf32>
    %211 = vector.broadcast %210 : vector<1x2xf32> to vector<2x2xf32>
    %212 = arith.subf %208, %211 : vector<2x2xf32>
    %213 = math.exp %212 : vector<2x2xf32>
    %cst_245 = arith.constant dense<0.000000e+00> : vector<2xf32>
    %214 = vector.multi_reduction <add>, %213, %cst_245 [0] : vector<2x2xf32> to vector<2xf32>
    %215 = vector.shape_cast %214 : vector<2xf32> to vector<1x2xf32>
    %216 = math.log %215 : vector<1x2xf32>
    %217 = arith.addf %210, %216 : vector<1x2xf32>
    %218 = vector.broadcast %217 : vector<1x2xf32> to vector<2x2xf32>
    %219 = arith.subf %208, %218 : vector<2x2xf32>
    %c0_246 = arith.constant 0 : index
    %c0_247 = arith.constant 0 : index
    %c0_248 = arith.constant 0 : index
    %220 = vector.load %arg7[%c0_246, %c0_247, %c0_248] : memref<1x2x2xf32, #tpu.memory_space<vmem>>, vector<1x2x2xf32>
    %221 = vector.shape_cast %220 : vector<1x2x2xf32> to vector<2x2xf32>
    %222 = vector.shape_cast %219 : vector<2x2xf32> to vector<1x2x2xf32>
    tpu.vector_store %arg7[%c0_246, %c0_247, %c0_248], %222 {strides = array<i32>} : memref<1x2x2xf32, #tpu.memory_space<vmem>>, vector<1x2x2xf32>,
    return
  }
  func.func @transform_0(%arg0: i32) -> (i32, i32, i32) {
    %c0_i32 = arith.constant 0 : i32
    %c0_i32_0 = arith.constant 0 : i32
    %c0_i32_1 = arith.constant 0 : i32
    return %arg0, %c0_i32, %c0_i32_0 : i32, i32, i32
  }
  func.func @transform_1(%arg0: i32) -> (i32, i32) {
    %c0_i32 = arith.constant 0 : i32
    %c0_i32_0 = arith.constant 0 : i32
    %c0_i32_1 = arith.constant 0 : i32
    return %c0_i32, %c0_i32_0 : i32, i32
  }
  func.func @transform_2(%arg0: i32) -> (i32, i32) {
    %c0_i32 = arith.constant 0 : i32
    %c0_i32_0 = arith.constant 0 : i32
    %c0_i32_1 = arith.constant 0 : i32
    return %c0_i32, %c0_i32_0 : i32, i32
  }
  func.func @transform_3(%arg0: i32) -> (i32, i32) {
    %c0_i32 = arith.constant 0 : i32
    %c0_i32_0 = arith.constant 0 : i32
    %c0_i32_1 = arith.constant 0 : i32
    return %c0_i32, %c0_i32_0 : i32, i32
  }
  func.func @transform_4(%arg0: i32) -> (i32, i32, i32) {
    %c0_i32 = arith.constant 0 : i32
    %c0_i32_0 = arith.constant 0 : i32
    %c0_i32_1 = arith.constant 0 : i32
    %c0_i32_2 = arith.constant 0 : i32
    return %c0_i32, %c0_i32_0, %c0_i32_1 : i32, i32, i32
  }
  func.func @transform_5(%arg0: i32) -> (i32, i32) {
    %c0_i32 = arith.constant 0 : i32
    %c0_i32_0 = arith.constant 0 : i32
    %c0_i32_1 = arith.constant 0 : i32
    return %c0_i32, %c0_i32_0 : i32, i32
  }
  func.func @transform_6(%arg0: i32) -> (i32, i32, i32) {
    %c0_i32 = arith.constant 0 : i32
    %c0_i32_0 = arith.constant 0 : i32
    %c0_i32_1 = arith.constant 0 : i32
    return %arg0, %c0_i32, %c0_i32_0 : i32, i32, i32
  }
  func.func @transform_7(%arg0: i32) -> (i32, i32, i32) {
    %c0_i32 = arith.constant 0 : i32
    %c0_i32_0 = arith.constant 0 : i32
    %c0_i32_1 = arith.constant 0 : i32
    return %arg0, %c0_i32, %c0_i32_0 : i32, i32, i32
  }
}

</mosaic_0001>

<llo_original>
// kernel: tpu_custom_call.1
$region0: #{tpu_custom_call.1}
  #allocation0 [shape = 'u32[]', space=smem, size = 0x4, offset = 0x4, fixed_abs, tag = 'smem constant byte address 0x4 - core index']
  #allocation1 [shape = 'u32[144,128]{1,0:T(1,128)}', space=vmem, size = 0x12000, scoped, tag = 'internal scratch']
  #allocation2 [shape = 'f32[200,256]{1,0:T(8,128)}', space=vmem, size = 0x32000, scoped, tag = 'scratch operand']
  %s0 = inlined_call_operand.vmem [shape: f32[4,8,128], index: 0, kind: input, shape index: {}]
  %s1 = inlined_call_operand.vmem [shape: f32[40,200], index: 1, kind: input, shape index: {}]
  %s2 = inlined_call_operand.vmem [shape: f32[40,1], index: 2, kind: input, shape index: {}]
  %s3 = inlined_call_operand.vmem [shape: f32[104,2], index: 3, kind: input, shape index: {}]
  %s4 = inlined_call_operand.vmem [shape: f32[2,40,2], index: 4, kind: input, shape index: {}]
  %s5 = inlined_call_operand.vmem [shape: f32[2,1], index: 5, kind: input, shape index: {}]
  %s6 = inlined_call_operand.hbm [shape: f32[2,2,2], index: 6, kind: output, shape index: {0}]
  %s7 = inlined_call_operand.vmem [shape: f32[2,40,4], index: 7, kind: output, shape index: {1}]
  %8 = xla_tuple %s6, %s7
  %s9 = sld [smem:[#allocation0]]
  $region65: #{tpu_custom_call.1} parent=0
    _
  %s11 = ssub.s32 1, %s9
  %s12 = scalar_select 0, %s11, %s9
  $region1: #{tpu_custom_call.1} parent=0
    #allocation3 [shape = 'u8[2048]{0}', space=vmem, size = 0x800, scoped, tag = 'output window, operand 0']
    #allocation4 [shape = 's32[2]{0}', space=sflag, size = 0x8, scoped, tag = 'scoped memory for tpu_custom_call.1']
    %13 = vsyncpa [#allocation4], 0
    %s14 = scalar_lea.sflag [#allocation4], 1
    %15 = vsyncpa %s14, 0
    loop: start=0, step=1, limit=4
    $region2: #{tpu_custom_call.1} parent=1 // loop_pre_header
      _
    $region3: #{tpu_custom_call.1} parent=1 // loop_header
      %s17 = sphi 0, %s21
      %p18 = scmp.ge.s32.totalorder %s17, 4
      %s27 = sphi 0, %s29
      %s30 = sphi 0, %s27
      %s31 = sphi 0, %s30
      %s47 = sphi 0, %s31
      %s51 = sphi 0, %s51
      %s53 = sphi 0, %s51
      %s54 = sphi 0, %s53
      %s68 = sphi 0, %s54
      %s72 = sphi 0, %s72
      %s74 = sphi 0, %s72
      %s75 = sphi 0, %s74
      %s89 = sphi 0, %s75
      %s93 = sphi 0, %s93
      %s95 = sphi 0, %s93
      %s96 = sphi 0, %s95
      %s110 = sphi 0, %s96
      %s114 = sphi 0, %s114
      %s116 = sphi 0, %s114
      %s117 = sphi 0, %s116
      %s131 = sphi 0, %s117
      %s135 = sphi 0, %s135
      %s137 = sphi 0, %s135
      %s138 = sphi 0, %s137
      %s152 = sphi 0, %s138
      %s158 = sphi 0, %s160
      %s161 = sphi 0, %s158
      %s162 = sphi 0, %s161
      %s178 = sphi 0, %s162
      %s184 = sphi 0, %s186
      %s187 = sphi 0, %s184
      %s188 = sphi 0, %s187
      %s204 = sphi 0, %s188
    $region4: #{tpu_custom_call.1} parent=1 // loop_header_branch
      %20 = sbr.rel (%p18) target = $region8
    $region5: #{tpu_custom_call.1} parent=1 // loop_body
      %s22 = ssub.s32 %s17, 1
      %s23 = ssub.s32 %s17, 2
      %s24 = sadd.s32 %s17, 1
      %s25 = ssub.s32 %s17, %s24
      %p26 = scmp.eq.s32.totalorder %s25, 0
      %s28 = sadd.s32 %s27, 1
      %s29 = scalar_select %p26, %s27, %s28
      %p32 = pneg %p26
      %p33 = scmp.eq.s32.totalorder %s17, 1
      %p34 = por %p32, %p33
      %p35 = scmp.ne.s32.totalorder %s27, %s30
      %p36 = scmp.eq.s32.totalorder %s17, 0
      %p37 = por %p35, %p36
      %p38 = scmp.ne.s32.totalorder %s27, %s30
      %p39 = scmp.eq.s32.totalorder %s22, 1
      %p40 = por %p38, %p39
      %p41 = scmp.ne.s32.totalorder %s30, %s31
      %p42 = scmp.eq.s32.totalorder %s22, 0
      %p43 = por %p41, %p42
      %p44 = scmp.ne.s32.totalorder %s30, %s31
      %p45 = scmp.eq.s32.totalorder %s23, 1
      %p46 = por %p44, %p45
      %p48 = scmp.ne.s32.totalorder %s31, %s47
      %p49 = scmp.eq.s32.totalorder %s23, 0
      %p50 = por %p48, %p49
      %s52 = sadd.s32 %s51, 1
      %p55 = scmp.eq.s32.totalorder %s17, 1
      %p56 = scmp.ne.s32.totalorder %s51, %s53
      %p57 = scmp.eq.s32.totalorder %s17, 0
      %p58 = por %p56, %p57
      %p59 = scmp.ne.s32.totalorder %s51, %s53
      %p60 = scmp.eq.s32.totalorder %s22, 1
      %p61 = por %p59, %p60
      %p62 = scmp.ne.s32.totalorder %s53, %s54
      %p63 = scmp.eq.s32.totalorder %s22, 0
      %p64 = por %p62, %p63
      %p65 = scmp.ne.s32.totalorder %s53, %s54
      %p66 = scmp.eq.s32.totalorder %s23, 1
      %p67 = por %p65, %p66
      %p69 = scmp.ne.s32.totalorder %s54, %s68
      %p70 = scmp.eq.s32.totalorder %s23, 0
      %p71 = por %p69, %p70
      %s73 = sadd.s32 %s72, 1
      %p76 = scmp.eq.s32.totalorder %s17, 1
      %p77 = scmp.ne.s32.totalorder %s72, %s74
      %p78 = scmp.eq.s32.totalorder %s17, 0
      %p79 = por %p77, %p78
      %p80 = scmp.ne.s32.totalorder %s72, %s74
      %p81 = scmp.eq.s32.totalorder %s22, 1
      %p82 = por %p80, %p81
      %p83 = scmp.ne.s32.totalorder %s74, %s75
      %p84 = scmp.eq.s32.totalorder %s22, 0
      %p85 = por %p83, %p84
      %p86 = scmp.ne.s32.totalorder %s74, %s75
      %p87 = scmp.eq.s32.totalorder %s23, 1
      %p88 = por %p86, %p87
      %p90 = scmp.ne.s32.totalorder %s75, %s89
      %p91 = scmp.eq.s32.totalorder %s23, 0
      %p92 = por %p90, %p91
      %s94 = sadd.s32 %s93, 1
      %p97 = scmp.eq.s32.totalorder %s17, 1
      %p98 = scmp.ne.s32.totalorder %s93, %s95
      %p99 = scmp.eq.s32.totalorder %s17, 0
      %p100 = por %p98, %p99
      %p101 = scmp.ne.s32.totalorder %s93, %s95
      %p102 = scmp.eq.s32.totalorder %s22, 1
      %p103 = por %p101, %p102
      %p104 = scmp.ne.s32.totalorder %s95, %s96
      %p105 = scmp.eq.s32.totalorder %s22, 0
      %p106 = por %p104, %p105
      %p107 = scmp.ne.s32.totalorder %s95, %s96
      %p108 = scmp.eq.s32.totalorder %s23, 1
      %p109 = por %p107, %p108
      %p111 = scmp.ne.s32.totalorder %s96, %s110
      %p112 = scmp.eq.s32.totalorder %s23, 0
      %p113 = por %p111, %p112
      %s115 = sadd.s32 %s114, 1
      %p118 = scmp.eq.s32.totalorder %s17, 1
      %p119 = scmp.ne.s32.totalorder %s114, %s116
      %p120 = scmp.eq.s32.totalorder %s17, 0
      %p121 = por %p119, %p120
      %p122 = scmp.ne.s32.totalorder %s114, %s116
      %p123 = scmp.eq.s32.totalorder %s22, 1
      %p124 = por %p122, %p123
      %p125 = scmp.ne.s32.totalorder %s116, %s117
      %p126 = scmp.eq.s32.totalorder %s22, 0
      %p127 = por %p125, %p126
      %p128 = scmp.ne.s32.totalorder %s116, %s117
      %p129 = scmp.eq.s32.totalorder %s23, 1
      %p130 = por %p128, %p129
      %p132 = scmp.ne.s32.totalorder %s117, %s131
      %p133 = scmp.eq.s32.totalorder %s23, 0
      %p134 = por %p132, %p133
      %s136 = sadd.s32 %s135, 1
      %p139 = scmp.eq.s32.totalorder %s17, 1
      %p140 = scmp.ne.s32.totalorder %s135, %s137
      %p141 = scmp.eq.s32.totalorder %s17, 0
      %p142 = por %p140, %p141
      %p143 = scmp.ne.s32.totalorder %s135, %s137
      %p144 = scmp.eq.s32.totalorder %s22, 1
      %p145 = por %p143, %p144
      %p146 = scmp.ne.s32.totalorder %s137, %s138
      %p147 = scmp.eq.s32.totalorder %s22, 0
      %p148 = por %p146, %p147
      %p149 = scmp.ne.s32.totalorder %s137, %s138
      %p150 = scmp.eq.s32.totalorder %s23, 1
      %p151 = por %p149, %p150
      %p153 = scmp.ne.s32.totalorder %s138, %s152
      %p154 = scmp.eq.s32.totalorder %s23, 0
      %p155 = por %p153, %p154
      %s156 = ssub.s32 %s17, %s24
      %p157 = scmp.eq.s32.totalorder %s156, 0
      %s159 = sadd.s32 %s158, 1
      %s160 = scalar_select %p157, %s158, %s159
      %p163 = pneg %p157
      %p164 = scmp.eq.s32.totalorder %s17, 1
      %p165 = por %p163, %p164
      %p166 = scmp.ne.s32.totalorder %s158, %s161
      %p167 = scmp.eq.s32.totalorder %s17, 0
      %p168 = por %p166, %p167
      %p169 = scmp.ne.s32.totalorder %s158, %s161
      %p170 = scmp.eq.s32.totalorder %s22, 1
      %p171 = por %p169, %p170
      %p172 = scmp.ne.s32.totalorder %s161, %s162
      %p173 = scmp.eq.s32.totalorder %s22, 0
      %p174 = por %p172, %p173
      %p175 = scmp.ne.s32.totalorder %s161, %s162
      %p176 = scmp.eq.s32.totalorder %s23, 1
      %p177 = por %p175, %p176
      %p179 = scmp.ne.s32.totalorder %s162, %s178
      %p180 = scmp.eq.s32.totalorder %s23, 0
      %p181 = por %p179, %p180
      %s182 = ssub.s32 %s17, %s24
      %p183 = scmp.eq.s32.totalorder %s182, 0
      %s185 = sadd.s32 %s184, 1
      %s186 = scalar_select %p183, %s184, %s185
      %p189 = pneg %p183
      %p190 = scmp.eq.s32.totalorder %s17, 1
      %p191 = por %p189, %p190
      %p192 = scmp.ne.s32.totalorder %s184, %s187
      %p193 = scmp.eq.s32.totalorder %s17, 0
      %p194 = por %p192, %p193
      %p195 = scmp.ne.s32.totalorder %s184, %s187
      %p196 = scmp.eq.s32.totalorder %s22, 1
      %p197 = por %p195, %p196
      %p198 = scmp.ne.s32.totalorder %s187, %s188
      %p199 = scmp.eq.s32.totalorder %s22, 0
      %p200 = por %p198, %p199
      %p201 = scmp.ne.s32.totalorder %s187, %s188
      %p202 = scmp.eq.s32.totalorder %s23, 1
      %p203 = por %p201, %p202
      %p205 = scmp.ne.s32.totalorder %s188, %s204
      %p206 = scmp.eq.s32.totalorder %s23, 0
      %p207 = por %p205, %p206
      %p208 = scmp.le.s32.totalorder 1, %s17
      %p209 = scmp.lt.s32.totalorder %s17, 3
      %p210 = pnand %p208, %p209
      %p211 = pneg %p210
      // Predicated region
      $region9: #{tpu_custom_call.1} parent=5 // pred_check
        _
      $region10: #{tpu_custom_call.1} parent=5 // pred_check_branch
        %213 = sbr.rel (%p210) target = $region12
      $region11: #{tpu_custom_call.1} parent=5 // pred_region
        %s214 = ssub.s32 %s17, 1
        // Predicated region
        $region13: #{tpu_custom_call.1} parent=11 // pred_check
          %p215 = pneg %p64
        $region14: #{tpu_custom_call.1} parent=11 // pred_check_branch
          %217 = sbr.rel (%p215) target = $region16
        $region15: #{tpu_custom_call.1} parent=11 // pred_region
          _
        $region16: #{tpu_custom_call.1} parent=11 // pred_fallthru
          _
        // Predicated region
        $region17: #{tpu_custom_call.1} parent=11 // pred_check
          %p218 = pneg %p85
        $region18: #{tpu_custom_call.1} parent=11 // pred_check_branch
          %220 = sbr.rel (%p218) target = $region20
        $region19: #{tpu_custom_call.1} parent=11 // pred_region
          _
        $region20: #{tpu_custom_call.1} parent=11 // pred_fallthru
          _
        // Predicated region
        $region21: #{tpu_custom_call.1} parent=11 // pred_check
          %p221 = pneg %p106
        $region22: #{tpu_custom_call.1} parent=11 // pred_check_branch
          %223 = sbr.rel (%p221) target = $region24
        $region23: #{tpu_custom_call.1} parent=11 // pred_region
          _
        $region24: #{tpu_custom_call.1} parent=11 // pred_fallthru
          _
        // Predicated region
        $region25: #{tpu_custom_call.1} parent=11 // pred_check
          %p224 = pneg %p127
        $region26: #{tpu_custom_call.1} parent=11 // pred_check_branch
          %226 = sbr.rel (%p224) target = $region28
        $region27: #{tpu_custom_call.1} parent=11 // pred_region
          _
        $region28: #{tpu_custom_call.1} parent=11 // pred_fallthru
          _
        // Predicated region
        $region29: #{tpu_custom_call.1} parent=11 // pred_check
          %p227 = pneg %p148
        $region30: #{tpu_custom_call.1} parent=11 // pred_check_branch
          %229 = sbr.rel (%p227) target = $region32
        $region31: #{tpu_custom_call.1} parent=11 // pred_region
          _
        $region32: #{tpu_custom_call.1} parent=11 // pred_fallthru
          _
      $region12: #{tpu_custom_call.1} parent=5 // pred_fallthru
        _
      %p230 = scmp.lt.s32.totalorder %s17, 2
      // Predicated region
      $region33: #{tpu_custom_call.1} parent=5 // pred_check
        %p231 = pneg %p230
      $region34: #{tpu_custom_call.1} parent=5 // pred_check_branch
        %233 = sbr.rel (%p231) target = $region36
      $region35: #{tpu_custom_call.1} parent=5 // pred_region
        // Predicated region
        $region37: #{tpu_custom_call.1} parent=35 // pred_check
          %p234 = pneg %p37
        $region38: #{tpu_custom_call.1} parent=35 // pred_check_branch
          %236 = sbr.rel (%p234) target = $region40
        $region39: #{tpu_custom_call.1} parent=35 // pred_region
          %s237 = smul.u32 2, %s17
          %p238 = scmp.lt.s32.totalorder %s237, 3
          %s239 = scalar_select %p238, %s237, 3
          %s240 = smul.addr %s239, 8
          %s241 = scalar_lea.vmem %s0, %s240
          %s242 = smul.u32 2, %s17
        $region40: #{tpu_custom_call.1} parent=35 // pred_fallthru
          _
      $region36: #{tpu_custom_call.1} parent=5 // pred_fallthru
        _
      %p243 = scmp.le.s32.totalorder 1, %s17
      %p244 = scmp.lt.s32.totalorder %s17, 3
      %p245 = pnand %p243, %p244
      %p246 = pneg %p245
      // Predicated region
      $region41: #{tpu_custom_call.1} parent=5 // pred_check
        _
      $region42: #{tpu_custom_call.1} parent=5 // pred_check_branch
        %248 = sbr.rel (%p245) target = $region44
      $region43: #{tpu_custom_call.1} parent=5 // pred_region
        %s249 = ssub.s32 %s17, 1
        %s250 = smul.u32 2, %s22
        %p251 = scmp.lt.s32.totalorder %s250, 3
        %s252 = scalar_select %p251, %s250, 3
        %s253 = smul.addr %s252, 8
        %s254 = scalar_lea.vmem %s0, %s253
        %p255 = pneg %p43
        %p256 = pneg %p40
        %p257 = pneg %p64
        %p258 = pneg %p61
        %p259 = pneg %p85
        %p260 = pneg %p82
        %p261 = pneg %p106
        %p262 = pneg %p103
        %p263 = pneg %p127
        %p264 = pneg %p124
        %p265 = pneg %p148
        %p266 = pneg %p145
        %p267 = pneg %p174
        %p268 = pneg %p171
        %s269 = sand.u32 %s161, 1
        %s270 = scalar_lea.sflag [#allocation4], %s269
        %s271 = sand.u32 %s161, 1
        %s272 = smul.addr %s271, 2
        %s273 = scalar_lea.vmem [#allocation3], %s272
        %p274 = pneg %p200
        %p275 = pneg %p197
        %p276 = scmp.lt.s32.totalorder %s22, 1
        %s277 = scalar_select %p276, %s22, 1
        %s278 = smul.addr %s277, 5
        %s279 = smul.addr %s278, 8
        %s280 = scalar_lea.vmem %s7, %s279
        %s281 = smul.u32 2, %s22
        %p282 = scmp.lt.s32.totalorder %s281, 3
        %s283 = scalar_select %p282, %s281, 3
        %s284 = smul.addr %s283, 8
        %s285 = scalar_lea.vmem %s0, %s284
        %s286 = smul.u32 2, %s22
        %p287 = scmp.lt.s32.totalorder %s22, 1
        %s288 = scalar_select %p287, %s22, 1
        %s289 = smul.addr %s288, 5
        %s290 = smul.addr %s289, 8
        %s291 = scalar_lea.vmem %s7, %s290
        %v292 = vld [vmem:[%s285] sm:$0xff]
        %vm293 = vcmask 850944
        %294 = vst.msk [vmem:[#allocation2] sm:$0xff] %vm293, %v292
        %v295 = vld [vmem:[%s285] sm:$0xff]
        %297 = vrot.lane.b32.xlu0 %v295, 127
        %v298 = vpop.permute.xlu0 %297
        %300 = vst.msk [vmem:[#allocation2 + $0x10] sm:$0xff] %vm293, %v298
        %v301 = vld [vmem:[%s285] sm:$0xff]
        %303 = vrot.lane.b32.xlu0 %v301, 126
        %v304 = vpop.permute.xlu0 %303
        %306 = vst.msk [vmem:[#allocation2 + $0x20] sm:$0xff] %vm293, %v304
        %v307 = vld [vmem:[%s285] sm:$0xff]
        %309 = vrot.lane.b32.xlu0 %v307, 125
        %v310 = vpop.permute.xlu0 %309
        %312 = vst.msk [vmem:[#allocation2 + $0x30] sm:$0xff] %vm293, %v310
        %v313 = vld [vmem:[%s285] sm:$0xff]
        %315 = vrot.lane.b32.xlu0 %v313, 124
        %v316 = vpop.permute.xlu0 %315
        %318 = vst.msk [vmem:[#allocation2 + $0x40] sm:$0xff] %vm293, %v316
        %v319 = vld [vmem:[%s285] sm:$0xff]
        %321 = vrot.lane.b32.xlu0 %v319, 123
        %v322 = vpop.permute.xlu0 %321
        %324 = vst.msk [vmem:[#allocation2 + $0x50] sm:$0xff] %vm293, %v322
        %v325 = vld [vmem:[%s285] sm:$0xff]
        %327 = vrot.lane.b32.xlu0 %v325, 122
        %v328 = vpop.permute.xlu0 %327
        %330 = vst.msk [vmem:[#allocation2 + $0x60] sm:$0xff] %vm293, %v328
        %v331 = vld [vmem:[%s285] sm:$0xff]
        %333 = vrot.lane.b32.xlu0 %v331, 121
        %v334 = vpop.permute.xlu0 %333
        %336 = vst.msk [vmem:[#allocation2 + $0x70] sm:$0xff] %vm293, %v334
        %v337 = vld [vmem:[%s285] sm:$0xff]
        %339 = vrot.lane.b32.xlu0 %v337, 120
        %v340 = vpop.permute.xlu0 %339
        %342 = vst.msk [vmem:[#allocation2 + $0x80] sm:$0xff] %vm293, %v340
        %v343 = vld [vmem:[%s285] sm:$0xff]
        %345 = vrot.lane.b32.xlu0 %v343, 119
        %v346 = vpop.permute.xlu0 %345
        %348 = vst.msk [vmem:[#allocation2 + $0x90] sm:$0xff] %vm293, %v346
        %v349 = vld [vmem:[%s285] sm:$0xff]
        %351 = vrot.lane.b32.xlu0 %v349, 118
        %v352 = vpop.permute.xlu0 %351
        %354 = vst.msk [vmem:[#allocation2 + $0xa0] sm:$0xff] %vm293, %v352
        %v355 = vld [vmem:[%s285] sm:$0xff]
        %357 = vrot.lane.b32.xlu0 %v355, 117
        %v358 = vpop.permute.xlu0 %357
        %360 = vst.msk [vmem:[#allocation2 + $0xb0] sm:$0xff] %vm293, %v358
        %v361 = vld [vmem:[%s285] sm:$0xff]
        %363 = vrot.lane.b32.xlu0 %v361, 116
        %v364 = vpop.permute.xlu0 %363
        %366 = vst.msk [vmem:[#allocation2 + $0xc0] sm:$0xff] %vm293, %v364
        %v367 = vld [vmem:[%s285] sm:$0xff]
        %369 = vrot.lane.b32.xlu0 %v367, 115
        %v370 = vpop.permute.xlu0 %369
        %372 = vst.msk [vmem:[#allocation2 + $0xd0] sm:$0xff] %vm293, %v370
        %v373 = vld [vmem:[%s285] sm:$0xff]
        %375 = vrot.lane.b32.xlu0 %v373, 114
        %v376 = vpop.permute.xlu0 %375
        %378 = vst.msk [vmem:[#allocation2 + $0xe0] sm:$0xff] %vm293, %v376
        %v379 = vld [vmem:[%s285] sm:$0xff]
        %381 = vrot.lane.b32.xlu0 %v379, 113
        %v382 = vpop.permute.xlu0 %381
        %384 = vst.msk [vmem:[#allocation2 + $0xf0] sm:$0xff] %vm293, %v382
        %v385 = vld [vmem:[%s285] sm:$0xff]
        %387 = vrot.lane.b32.xlu0 %v385, 112
        %v388 = vpop.permute.xlu0 %387
        %390 = vst.msk [vmem:[#allocation2 + $0x100] sm:$0xff] %vm293, %v388
        %v391 = vld [vmem:[%s285] sm:$0xff]
        %393 = vrot.lane.b32.xlu0 %v391, 111
        %v394 = vpop.permute.xlu0 %393
        %396 = vst.msk [vmem:[#allocation2 + $0x110] sm:$0xff] %vm293, %v394
        %v397 = vld [vmem:[%s285] sm:$0xff]
        %399 = vrot.lane.b32.xlu0 %v397, 110
        %v400 = vpop.permute.xlu0 %399
        %402 = vst.msk [vmem:[#allocation2 + $0x120] sm:$0xff] %vm293, %v400
        %v403 = vld [vmem:[%s285] sm:$0xff]
        %405 = vrot.lane.b32.xlu0 %v403, 109
        %v406 = vpop.permute.xlu0 %405
        %408 = vst.msk [vmem:[#allocation2 + $0x130] sm:$0xff] %vm293, %v406
        %v409 = vld [vmem:[%s285] sm:$0xff]
        %411 = vrot.lane.b32.xlu0 %v409, 108
        %v412 = vpop.permute.xlu0 %411
        %414 = vst.msk [vmem:[#allocation2 + $0x140] sm:$0xff] %vm293, %v412
        %v415 = vld [vmem:[%s285] sm:$0xff]
        %417 = vrot.lane.b32.xlu0 %v415, 107
        %v418 = vpop.permute.xlu0 %417
        %420 = vst.msk [vmem:[#allocation2 + $0x150] sm:$0xff] %vm293, %v418
        %v421 = vld [vmem:[%s285] sm:$0xff]
        %423 = vrot.lane.b32.xlu0 %v421, 106
        %v424 = vpop.permute.xlu0 %423
        %426 = vst.msk [vmem:[#allocation2 + $0x160] sm:$0xff] %vm293, %v424
        %v427 = vld [vmem:[%s285] sm:$0xff]
        %429 = vrot.lane.b32.xlu0 %v427, 105
        %v430 = vpop.permute.xlu0 %429
        %432 = vst.msk [vmem:[#allocation2 + $0x170] sm:$0xff] %vm293, %v430
        %v433 = vld [vmem:[%s285] sm:$0xff]
        %435 = vrot.lane.b32.xlu0 %v433, 104
        %v436 = vpop.permute.xlu0 %435
        %438 = vst.msk [vmem:[#allocation2 + $0x180] sm:$0xff] %vm293, %v436
        %s439 = scalar_lea.vmem %s285, 8
        %v440 = vld [vmem:[%s439] sm:$0xff]
        %441 = vst.msk [vmem:[#allocation2 + $0x8] sm:$0xff] %vm293, %v440
        %v442 = vld [vmem:[%s439] sm:$0xff]
        %444 = vrot.lane.b32.xlu0 %v442, 127
        %v445 = vpop.permute.xlu0 %444
        %447 = vst.msk [vmem:[#allocation2 + $0x18] sm:$0xff] %vm293, %v445
        %v448 = vld [vmem:[%s439] sm:$0xff]
        %450 = vrot.lane.b32.xlu0 %v448, 126
        %v451 = vpop.permute.xlu0 %450
        %453 = vst.msk [vmem:[#allocation2 + $0x28] sm:$0xff] %vm293, %v451
        %v454 = vld [vmem:[%s439] sm:$0xff]
        %456 = vrot.lane.b32.xlu0 %v454, 125
        %v457 = vpop.permute.xlu0 %456
        %459 = vst.msk [vmem:[#allocation2 + $0x38] sm:$0xff] %vm293, %v457
        %v460 = vld [vmem:[%s439] sm:$0xff]
        %462 = vrot.lane.b32.xlu0 %v460, 124
        %v463 = vpop.permute.xlu0 %462
        %465 = vst.msk [vmem:[#allocation2 + $0x48] sm:$0xff] %vm293, %v463
        %v466 = vld [vmem:[%s439] sm:$0xff]
        %468 = vrot.lane.b32.xlu0 %v466, 123
        %v469 = vpop.permute.xlu0 %468
        %471 = vst.msk [vmem:[#allocation2 + $0x58] sm:$0xff] %vm293, %v469
        %v472 = vld [vmem:[%s439] sm:$0xff]
        %474 = vrot.lane.b32.xlu0 %v472, 122
        %v475 = vpop.permute.xlu0 %474
        %477 = vst.msk [vmem:[#allocation2 + $0x68] sm:$0xff] %vm293, %v475
        %v478 = vld [vmem:[%s439] sm:$0xff]
        %480 = vrot.lane.b32.xlu0 %v478, 121
        %v481 = vpop.permute.xlu0 %480
        %483 = vst.msk [vmem:[#allocation2 + $0x78] sm:$0xff] %vm293, %v481
        %v484 = vld [vmem:[%s439] sm:$0xff]
        %486 = vrot.lane.b32.xlu0 %v484, 120
        %v487 = vpop.permute.xlu0 %486
        %489 = vst.msk [vmem:[#allocation2 + $0x88] sm:$0xff] %vm293, %v487
        %v490 = vld [vmem:[%s439] sm:$0xff]
        %492 = vrot.lane.b32.xlu0 %v490, 119
        %v493 = vpop.permute.xlu0 %492
        %495 = vst.msk [vmem:[#allocation2 + $0x98] sm:$0xff] %vm293, %v493
        %v496 = vld [vmem:[%s439] sm:$0xff]
        %498 = vrot.lane.b32.xlu0 %v496, 118
        %v499 = vpop.permute.xlu0 %498
        %501 = vst.msk [vmem:[#allocation2 + $0xa8] sm:$0xff] %vm293, %v499
        %v502 = vld [vmem:[%s439] sm:$0xff]
        %504 = vrot.lane.b32.xlu0 %v502, 117
        %v505 = vpop.permute.xlu0 %504
        %507 = vst.msk [vmem:[#allocation2 + $0xb8] sm:$0xff] %vm293, %v505
        %v508 = vld [vmem:[%s439] sm:$0xff]
        %510 = vrot.lane.b32.xlu0 %v508, 116
        %v511 = vpop.permute.xlu0 %510
        %513 = vst.msk [vmem:[#allocation2 + $0xc8] sm:$0xff] %vm293, %v511
        %v514 = vld [vmem:[%s439] sm:$0xff]
        %516 = vrot.lane.b32.xlu0 %v514, 115
        %v517 = vpop.permute.xlu0 %516
        %519 = vst.msk [vmem:[#allocation2 + $0xd8] sm:$0xff] %vm293, %v517
        %v520 = vld [vmem:[%s439] sm:$0xff]
        %522 = vrot.lane.b32.xlu0 %v520, 114
        %v523 = vpop.permute.xlu0 %522
        %525 = vst.msk [vmem:[#allocation2 + $0xe8] sm:$0xff] %vm293, %v523
        %v526 = vld [vmem:[%s439] sm:$0xff]
        %528 = vrot.lane.b32.xlu0 %v526, 113
        %v529 = vpop.permute.xlu0 %528
        %531 = vst.msk [vmem:[#allocation2 + $0xf8] sm:$0xff] %vm293, %v529
        %v532 = vld [vmem:[%s439] sm:$0xff]
        %534 = vrot.lane.b32.xlu0 %v532, 112
        %v535 = vpop.permute.xlu0 %534
        %537 = vst.msk [vmem:[#allocation2 + $0x108] sm:$0xff] %vm293, %v535
        %v538 = vld [vmem:[%s439] sm:$0xff]
        %540 = vrot.lane.b32.xlu0 %v538, 111
        %v541 = vpop.permute.xlu0 %540
        %543 = vst.msk [vmem:[#allocation2 + $0x118] sm:$0xff] %vm293, %v541
        %v544 = vld [vmem:[%s439] sm:$0xff]
        %546 = vrot.lane.b32.xlu0 %v544, 110
        %v547 = vpop.permute.xlu0 %546
        %549 = vst.msk [vmem:[#allocation2 + $0x128] sm:$0xff] %vm293, %v547
        %v550 = vld [vmem:[%s439] sm:$0xff]
        %552 = vrot.lane.b32.xlu0 %v550, 109
        %v553 = vpop.permute.xlu0 %552
        %555 = vst.msk [vmem:[#allocation2 + $0x138] sm:$0xff] %vm293, %v553
        %v556 = vld [vmem:[%s439] sm:$0xff]
        %558 = vrot.lane.b32.xlu0 %v556, 108
        %v559 = vpop.permute.xlu0 %558
        %561 = vst.msk [vmem:[#allocation2 + $0x148] sm:$0xff] %vm293, %v559
        %v562 = vld [vmem:[%s439] sm:$0xff]
        %564 = vrot.lane.b32.xlu0 %v562, 107
        %v565 = vpop.permute.xlu0 %564
        %567 = vst.msk [vmem:[#allocation2 + $0x158] sm:$0xff] %vm293, %v565
        %v568 = vld [vmem:[%s439] sm:$0xff]
        %570 = vrot.lane.b32.xlu0 %v568, 106
        %v571 = vpop.permute.xlu0 %570
        %573 = vst.msk [vmem:[#allocation2 + $0x168] sm:$0xff] %vm293, %v571
        %v574 = vld [vmem:[%s439] sm:$0xff]
        %576 = vrot.lane.b32.xlu0 %v574, 105
        %v577 = vpop.permute.xlu0 %576
        %579 = vst.msk [vmem:[#allocation2 + $0x178] sm:$0xff] %vm293, %v577
        %v580 = vld [vmem:[%s439] sm:$0xff]
        %582 = vrot.lane.b32.xlu0 %v580, 104
        %v583 = vpop.permute.xlu0 %582
        %585 = vst.msk [vmem:[#allocation2 + $0x188] sm:$0xff] %vm293, %v583
        %v586 = vld [vmem:[%s1] sm:$0xff]
        %v587 = vld [vmem:[%s1 + $0x8] sm:$0xff]
        %v588 = vld [vmem:[%s1 + $0x10] sm:$0xff]
        %v589 = vld [vmem:[%s1 + $0x18] sm:$0xff]
        %v590 = vld [vmem:[%s1 + $0x20] sm:$0xff]
        %v591 = vld [vmem:[%s1 + $0x28] sm:$0xff]
        %v592 = vld [vmem:[%s1 + $0x30] sm:$0xff]
        %v593 = vld [vmem:[%s1 + $0x38] sm:$0xff]
        %v594 = vld [vmem:[%s1 + $0x40] sm:$0xff]
        %v595 = vld [vmem:[%s1 + $0x48] sm:$0xff]
        %v596 = vld [vmem:[%s2] sm:$0xff]
        %v597 = vld [vmem:[%s2 + $0x8] sm:$0xff]
        %v598 = vld [vmem:[%s2 + $0x10] sm:$0xff]
        %v599 = vld [vmem:[%s2 + $0x18] sm:$0xff]
        %v600 = vld [vmem:[%s2 + $0x20] sm:$0xff]
        %v601 = vld [vmem:[%s3] sm:$0xff]
        %v602 = vld [vmem:[%s3 + $0x8] sm:$0xff]
        %v603 = vld [vmem:[%s3 + $0x10] sm:$0xff]
        %v604 = vld [vmem:[%s3 + $0x18] sm:$0xff]
        %v605 = vld [vmem:[%s3 + $0x20] sm:$0xff]
        %v606 = vld [vmem:[%s3 + $0x28] sm:$0xff]
        %v607 = vld [vmem:[%s3 + $0x30] sm:$0xff]
        %v608 = vld [vmem:[%s3 + $0x38] sm:$0xff]
        %v609 = vld [vmem:[%s3 + $0x40] sm:$0xff]
        %v610 = vld [vmem:[%s3 + $0x48] sm:$0xff]
        %v611 = vld [vmem:[%s3 + $0x50] sm:$0xff]
        %v612 = vld [vmem:[%s3 + $0x58] sm:$0xff]
        %v613 = vld [vmem:[%s3 + $0x60] sm:$0xff]
        %v614 = vld [vmem:[#allocation2] sm:$0xff]
        %v615 = vld [vmem:[#allocation2 + $0x10] sm:$0xff]
        %v616 = vld [vmem:[#allocation2 + $0x20] sm:$0xff]
        %v617 = vld [vmem:[#allocation2 + $0x30] sm:$0xff]
        %v618 = vld [vmem:[#allocation2 + $0x40] sm:$0xff]
        %v619 = vld [vmem:[#allocation2 + $0x50] sm:$0xff]
        %v620 = vld [vmem:[#allocation2 + $0x60] sm:$0xff]
        %v621 = vld [vmem:[#allocation2 + $0x70] sm:$0xff]
        %v622 = vld [vmem:[#allocation2 + $0x80] sm:$0xff]
        %v623 = vld [vmem:[#allocation2 + $0x90] sm:$0xff]
        %v624 = vld [vmem:[#allocation2 + $0xa0] sm:$0xff]
        %v625 = vld [vmem:[#allocation2 + $0xb0] sm:$0xff]
        %v626 = vld [vmem:[#allocation2 + $0xc0] sm:$0xff]
        %v627 = vld [vmem:[#allocation2 + $0xd0] sm:$0xff]
        %v628 = vld [vmem:[#allocation2 + $0xe0] sm:$0xff]
        %v629 = vld [vmem:[#allocation2 + $0xf0] sm:$0xff]
        %v630 = vld [vmem:[#allocation2 + $0x100] sm:$0xff]
        %v631 = vld [vmem:[#allocation2 + $0x110] sm:$0xff]
        %v632 = vld [vmem:[#allocation2 + $0x120] sm:$0xff]
        %v633 = vld [vmem:[#allocation2 + $0x130] sm:$0xff]
        %v634 = vld [vmem:[#allocation2 + $0x140] sm:$0xff]
        %v635 = vld [vmem:[#allocation2 + $0x150] sm:$0xff]
        %v636 = vld [vmem:[#allocation2 + $0x160] sm:$0xff]
        %v637 = vld [vmem:[#allocation2 + $0x170] sm:$0xff]
        %v638 = vld [vmem:[#allocation2 + $0x180] sm:$0xff]
        %640 = vset.pattern.permute.xlu0 0
        %641 = vperm.xlu0 %640, %v596
        %v642 = vpop.permute.xlu0 %641
        %645 = vset.pattern.permute.xlu0 0
        %646 = vperm.xlu0 %645, %v597
        %v647 = vpop.permute.xlu0 %646
        %650 = vset.pattern.permute.xlu0 0
        %651 = vperm.xlu0 %650, %v598
        %v652 = vpop.permute.xlu0 %651
        %655 = vset.pattern.permute.xlu0 0
        %656 = vperm.xlu0 %655, %v599
        %v657 = vpop.permute.xlu0 %656
        %660 = vset.pattern.permute.xlu0 0
        %661 = vperm.xlu0 %660, %v600
        %v662 = vpop.permute.xlu0 %661
        %vm664 = vcmask 588800
        %v666 = vsel %vm664, %v587, 0
        %v669 = vsel %vm664, %v589, 0
        %v672 = vsel %vm664, %v591, 0
        %v675 = vsel %vm664, %v593, 0
        %v678 = vsel %vm664, %v595, 0
        %680 = vmatprep.subr.mxu0 0.0
        %681 = vmatpush1.msra.mxu0 %v629
        %682 = vmatprep.subr.mxu0 0.0
        %683 = vmatpush1.msra.mxu0 %v628
        %684 = vmatprep.subr.mxu0 0.0
        %685 = vmatpush1.msra.mxu0 %v627
        %686 = vmatprep.subr.mxu0 0.0
        %687 = vmatpush1.msra.mxu0 %v626
        %688 = vmatprep.subr.mxu0 0.0
        %689 = vmatpush1.msra.mxu0 %v625
        %690 = vmatprep.subr.mxu0 0.0
        %691 = vmatpush1.msra.mxu0 %v624
        %692 = vmatprep.subr.mxu0 0.0
        %693 = vmatpush1.msra.mxu0 %v623
        %694 = vmatprep.subr.mxu0 0.0
        %695 = vmatpush1.msra.mxu0 %v622
        %696 = vmatprep.subr.mxu0 0.0
        %697 = vmatpush1.msra.mxu0 %v621
        %698 = vmatprep.subr.mxu0 0.0
        %699 = vmatpush1.msra.mxu0 %v620
        %700 = vmatprep.subr.mxu0 0.0
        %701 = vmatpush1.msra.mxu0 %v619
        %702 = vmatprep.subr.mxu0 0.0
        %703 = vmatpush1.msra.mxu0 %v618
        %704 = vmatprep.subr.mxu0 0.0
        %705 = vmatpush1.msra.mxu0 %v617
        %706 = vmatprep.subr.mxu0 0.0
        %707 = vmatpush1.msra.mxu0 %v616
        %708 = vmatprep.subr.mxu0 0.0
        %709 = vmatpush1.msra.mxu0 %v615
        %710 = vmatprep.subr.mxu0 0.0
        %711 = vmatpush1.msra.mxu0 %v614
        %712 = vmatprep.subr.mxu0 0.0
        %713 = vmatpush2.msra.mxu0 0.0
        %714 = vmatprep.subr.mxu0 0.0
        %715 = vmatpush2.msra.mxu0 0.0
        %716 = vmatprep.subr.mxu0 0.0
        %717 = vmatpush2.msra.mxu0 0.0
        %718 = vmatprep.subr.mxu0 0.0
        %719 = vmatpush2.msra.mxu0 0.0
        %720 = vmatprep.subr.mxu0 0.0
        %721 = vmatpush2.msra.mxu0 0.0
        %722 = vmatprep.subr.mxu0 0.0
        %723 = vmatpush2.msra.mxu0 0.0
        %724 = vmatprep.subr.mxu0 0.0
        %725 = vmatpush2.msra.mxu0 0.0
        %726 = vmatprep.subr.mxu0 0.0
        %727 = vmatpush2.msra.mxu0 %v638
        %728 = vmatprep.subr.mxu0 0.0
        %729 = vmatpush2.msra.mxu0 %v637
        %730 = vmatprep.subr.mxu0 0.0
        %731 = vmatpush2.msra.mxu0 %v636
        %732 = vmatprep.subr.mxu0 0.0
        %733 = vmatpush2.msra.mxu0 %v635
        %734 = vmatprep.subr.mxu0 0.0
        %735 = vmatpush2.msra.mxu0 %v634
        %736 = vmatprep.subr.mxu0 0.0
        %737 = vmatpush2.msra.mxu0 %v633
        %738 = vmatprep.subr.mxu0 0.0
        %739 = vmatpush2.msra.mxu0 %v632
        %740 = vmatprep.subr.mxu0 0.0
        %741 = vmatpush2.msra.mxu0 %v631
        %742 = vmatprep.subr.mxu0 0.0
        %743 = vmatpush2.msra.mxu0 %v630
        %744 = vmatprep.mubr.f32.mxu0 %v666
        %745 = vmatmul.mubr.f32.gmra.mxu0 %v586
        %v746 = vpop.f32.mrf.mxu0
        %v747 = vadd.f32 %v642, %v746
        %v748 = vpop.f32.mrf.mxu0
        %749 = vmatprep.mubr.f32.mxu0 %v669
        %750 = vmatmul.mubr.f32.gmra.mxu0 %v588
        %v751 = vpop.f32.mrf.mxu0
        %v752 = vadd.f32 %v647, %v751
        %v753 = vpop.f32.mrf.mxu0
        %754 = vmatprep.mubr.f32.mxu0 %v672
        %755 = vmatmul.mubr.f32.gmra.mxu0 %v590
        %v756 = vpop.f32.mrf.mxu0
        %v757 = vadd.f32 %v652, %v756
        %v758 = vpop.f32.mrf.mxu0
        %759 = vmatprep.mubr.f32.mxu0 %v675
        %760 = vmatmul.mubr.f32.gmra.mxu0 %v592
        %v761 = vpop.f32.mrf.mxu0
        %v762 = vadd.f32 %v657, %v761
        %v763 = vpop.f32.mrf.mxu0
        %764 = vmatprep.mubr.f32.mxu0 %v678
        %765 = vmatmul.mubr.f32.gmra.mxu0 %v594
        %v766 = vpop.f32.mrf.mxu0
        %v767 = vadd.f32 %v662, %v766
        %v768 = vpop.f32.mrf.mxu0
        %769 = vdwg.mxu0
        %v770 = vmul.f32 %v747, %v747
        %v771 = vmul.f32 %v752, %v752
        %v772 = vmul.f32 %v757, %v757
        %v773 = vmul.f32 %v762, %v762
        %v774 = vmul.f32 %v767, %v767
        %v776 = vsel %vm293, %v770, 0
        %v779 = vsel %vm293, %v771, 0
        %v782 = vsel %vm293, %v772, 0
        %v785 = vsel %vm293, %v773, 0
        %v788 = vsel %vm293, %v774, 0
        %790 = vmatprep.subr.mxu0 0.0
        %791 = vmatpush1.msra.mxu0 0.0
        %792 = vmatprep.subr.mxu0 0.0
        %793 = vmatpush1.msra.mxu0 0.0
        %794 = vmatprep.subr.mxu0 0.0
        %795 = vmatpush1.msra.mxu0 0.0
        %796 = vmatprep.subr.mxu0 0.0
        %797 = vmatpush1.msra.mxu0 %v613
        %798 = vmatprep.subr.mxu0 0.0
        %799 = vmatpush1.msra.mxu0 %v612
        %800 = vmatprep.subr.mxu0 0.0
        %801 = vmatpush1.msra.mxu0 %v611
        %802 = vmatprep.subr.mxu0 0.0
        %803 = vmatpush1.msra.mxu0 %v610
        %804 = vmatprep.subr.mxu0 0.0
        %805 = vmatpush1.msra.mxu0 %v609
        %806 = vmatprep.subr.mxu0 0.0
        %807 = vmatpush1.msra.mxu0 %v608
        %808 = vmatprep.subr.mxu0 0.0
        %809 = vmatpush1.msra.mxu0 %v607
        %810 = vmatprep.subr.mxu0 0.0
        %811 = vmatpush1.msra.mxu0 %v606
        %812 = vmatprep.subr.mxu0 0.0
        %813 = vmatpush1.msra.mxu0 %v605
        %814 = vmatprep.subr.mxu0 0.0
        %815 = vmatpush1.msra.mxu0 %v604
        %816 = vmatprep.subr.mxu0 0.0
        %817 = vmatpush1.msra.mxu0 %v603
        %818 = vmatprep.subr.mxu0 0.0
        %819 = vmatpush1.msra.mxu0 %v602
        %820 = vmatprep.subr.mxu0 0.0
        %821 = vmatpush1.msra.mxu0 %v601
        %822 = vmatprep.subr.mxu0 0.0
        %823 = vmatpush2.msra.mxu0 0.0
        %824 = vmatprep.subr.mxu0 0.0
        %825 = vmatpush2.msra.mxu0 0.0
        %826 = vmatprep.subr.mxu0 0.0
        %827 = vmatpush2.msra.mxu0 0.0
        %828 = vmatprep.subr.mxu0 0.0
        %829 = vmatpush2.msra.mxu0 0.0
        %830 = vmatprep.subr.mxu0 0.0
        %831 = vmatpush2.msra.mxu0 0.0
        %832 = vmatprep.subr.mxu0 0.0
        %833 = vmatpush2.msra.mxu0 0.0
        %834 = vmatprep.subr.mxu0 0.0
        %835 = vmatpush2.msra.mxu0 0.0
        %836 = vmatprep.subr.mxu0 0.0
        %837 = vmatpush2.msra.mxu0 0.0
        %838 = vmatprep.subr.mxu0 0.0
        %839 = vmatpush2.msra.mxu0 0.0
        %840 = vmatprep.subr.mxu0 0.0
        %841 = vmatpush2.msra.mxu0 0.0
        %842 = vmatprep.subr.mxu0 0.0
        %843 = vmatpush2.msra.mxu0 0.0
        %844 = vmatprep.subr.mxu0 0.0
        %845 = vmatpush2.msra.mxu0 0.0
        %846 = vmatprep.subr.mxu0 0.0
        %847 = vmatpush2.msra.mxu0 0.0
        %848 = vmatprep.subr.mxu0 0.0
        %849 = vmatpush2.msra.mxu0 0.0
        %850 = vmatprep.subr.mxu0 0.0
        %851 = vmatpush2.msra.mxu0 0.0
        %852 = vmatprep.subr.mxu0 0.0
        %853 = vmatpush2.msra.mxu0 0.0
        %854 = vmatprep.mubr.f32.mxu0 0.0
        %855 = vmatmul.mubr.f32.gmra.mxu0 %v776
        %v856 = vpop.f32.mrf.mxu0
        %v857 = vadd.f32 0.0, %v856
        %v858 = vpop.f32.mrf.mxu0
        %859 = vmatprep.mubr.f32.mxu0 0.0
        %860 = vmatmul.mubr.f32.gmra.mxu0 %v779
        %v861 = vpop.f32.mrf.mxu0
        %v862 = vadd.f32 0.0, %v861
        %v863 = vpop.f32.mrf.mxu0
        %864 = vmatprep.mubr.f32.mxu0 0.0
        %865 = vmatmul.mubr.f32.gmra.mxu0 %v782
        %v866 = vpop.f32.mrf.mxu0
        %v867 = vadd.f32 0.0, %v866
        %v868 = vpop.f32.mrf.mxu0
        %869 = vmatprep.mubr.f32.mxu0 0.0
        %870 = vmatmul.mubr.f32.gmra.mxu0 %v785
        %v871 = vpop.f32.mrf.mxu0
        %v872 = vadd.f32 0.0, %v871
        %v873 = vpop.f32.mrf.mxu0
        %874 = vmatprep.mubr.f32.mxu0 0.0
        %875 = vmatmul.mubr.f32.gmra.mxu0 %v788
        %v876 = vpop.f32.mrf.mxu0
        %v877 = vadd.f32 0.0, %v876
        %v878 = vpop.f32.mrf.mxu0
        %879 = vdwg.mxu0
        %v880 = vmax.f32 %v857, 1e-06
        %v881 = vmax.f32 %v862, 1e-06
        %v882 = vmax.f32 %v867, 1e-06
        %v883 = vmax.f32 %v872, 1e-06
        %v884 = vmax.f32 %v877, 1e-06
        %v885 = vlog2.pop %v880
        %v886 = vmul.f32 %v885, 0.6931472
        %v887 = vlog2.pop %v881
        %v888 = vmul.f32 %v887, 0.6931472
        %v889 = vlog2.pop %v882
        %v890 = vmul.f32 %v889, 0.6931472
        %v891 = vlog2.pop %v883
        %v892 = vmul.f32 %v891, 0.6931472
        %v893 = vlog2.pop %v884
        %v894 = vmul.f32 %v893, 0.6931472
        %v895 = vld [vmem:[%s4] sm:$0xff]
        %v896 = vld [vmem:[%s4 + $0x8] sm:$0xff]
        %v897 = vld [vmem:[%s4 + $0x10] sm:$0xff]
        %v898 = vld [vmem:[%s4 + $0x18] sm:$0xff]
        %v899 = vld [vmem:[%s4 + $0x20] sm:$0xff]
        %v900 = vmul.f32 %v895, %v886
        %v901 = vmul.f32 %v896, %v888
        %v902 = vmul.f32 %v897, %v890
        %v903 = vmul.f32 %v898, %v892
        %v904 = vmul.f32 %v899, %v894
        %vm905 = vcmask 15360
        %v906 = vsel %vm905, %v900, 0.0
        %907 = vadd.xlane.f32.xlu0 %v906
        %v908 = vpop.xlane.xlu0 %907
        %v909 = vsel %vm905, %v901, 0.0
        %910 = vadd.xlane.f32.xlu0 %v909
        %v911 = vpop.xlane.xlu0 %910
        %v912 = vsel %vm905, %v902, 0.0
        %913 = vadd.xlane.f32.xlu0 %v912
        %v914 = vpop.xlane.xlu0 %913
        %v915 = vsel %vm905, %v903, 0.0
        %916 = vadd.xlane.f32.xlu0 %v915
        %v917 = vpop.xlane.xlu0 %916
        %v918 = vsel %vm905, %v904, 0.0
        %919 = vadd.xlane.f32.xlu0 %v918
        %v920 = vpop.xlane.xlu0 %919
        %v921 = vadd.f32 %v908, %v911
        %v922 = vadd.f32 %v921, %v914
        %v923 = vadd.f32 %v922, %v917
        %v924 = vadd.f32 %v923, %v920
        %v925 = vrot.slane %v924, 4
        %v926 = vadd.f32 %v924, %v925
        %v927 = vrot.slane %v926, 2
        %v928 = vadd.f32 %v926, %v927
        %v929 = vrot.slane %v928, 1
        %v930 = vadd.f32 %v928, %v929
        %s931 = scalar_lea.vmem %s4, 40
        %v932 = vld [vmem:[%s931] sm:$0xff]
        %v933 = vld [vmem:[%s931 + $0x8] sm:$0xff]
        %v934 = vld [vmem:[%s931 + $0x10] sm:$0xff]
        %v935 = vld [vmem:[%s931 + $0x18] sm:$0xff]
        %v936 = vld [vmem:[%s931 + $0x20] sm:$0xff]
        %v937 = vmul.f32 %v932, %v886
        %v938 = vmul.f32 %v933, %v888
        %v939 = vmul.f32 %v934, %v890
        %v940 = vmul.f32 %v935, %v892
        %v941 = vmul.f32 %v936, %v894
        %v942 = vsel %vm905, %v937, 0.0
        %943 = vadd.xlane.f32.xlu0 %v942
        %v944 = vpop.xlane.xlu0 %943
        %v945 = vsel %vm905, %v938, 0.0
        %946 = vadd.xlane.f32.xlu0 %v945
        %v947 = vpop.xlane.xlu0 %946
        %v948 = vsel %vm905, %v939, 0.0
        %949 = vadd.xlane.f32.xlu0 %v948
        %v950 = vpop.xlane.xlu0 %949
        %v951 = vsel %vm905, %v940, 0.0
        %952 = vadd.xlane.f32.xlu0 %v951
        %v953 = vpop.xlane.xlu0 %952
        %v954 = vsel %vm905, %v941, 0.0
        %955 = vadd.xlane.f32.xlu0 %v954
        %v956 = vpop.xlane.xlu0 %955
        %v957 = vadd.f32 %v944, %v947
        %v958 = vadd.f32 %v957, %v950
        %v959 = vadd.f32 %v958, %v953
        %v960 = vadd.f32 %v959, %v956
        %v961 = vrot.slane %v960, 4
        %v962 = vadd.f32 %v960, %v961
        %v963 = vrot.slane %v962, 2
        %v964 = vadd.f32 %v962, %v963
        %v965 = vrot.slane %v964, 1
        %v966 = vadd.f32 %v964, %v965
        %vm967 = vcmask 1040384
        %v968 = vsel %vm967, %v930, %v966
        %v969 = vld [vmem:[#allocation2 + $0x8] sm:$0xff]
        %v970 = vld [vmem:[#allocation2 + $0x18] sm:$0xff]
        %v971 = vld [vmem:[#allocation2 + $0x28] sm:$0xff]
        %v972 = vld [vmem:[#allocation2 + $0x38] sm:$0xff]
        %v973 = vld [vmem:[#allocation2 + $0x48] sm:$0xff]
        %v974 = vld [vmem:[#allocation2 + $0x58] sm:$0xff]
        %v975 = vld [vmem:[#allocation2 + $0x68] sm:$0xff]
        %v976 = vld [vmem:[#allocation2 + $0x78] sm:$0xff]
        %v977 = vld [vmem:[#allocation2 + $0x88] sm:$0xff]
        %v978 = vld [vmem:[#allocation2 + $0x98] sm:$0xff]
        %v979 = vld [vmem:[#allocation2 + $0xa8] sm:$0xff]
        %v980 = vld [vmem:[#allocation2 + $0xb8] sm:$0xff]
        %v981 = vld [vmem:[#allocation2 + $0xc8] sm:$0xff]
        %v982 = vld [vmem:[#allocation2 + $0xd8] sm:$0xff]
        %v983 = vld [vmem:[#allocation2 + $0xe8] sm:$0xff]
        %v984 = vld [vmem:[#allocation2 + $0xf8] sm:$0xff]
        %v985 = vld [vmem:[#allocation2 + $0x108] sm:$0xff]
        %v986 = vld [vmem:[#allocation2 + $0x118] sm:$0xff]
        %v987 = vld [vmem:[#allocation2 + $0x128] sm:$0xff]
        %v988 = vld [vmem:[#allocation2 + $0x138] sm:$0xff]
        %v989 = vld [vmem:[#allocation2 + $0x148] sm:$0xff]
        %v990 = vld [vmem:[#allocation2 + $0x158] sm:$0xff]
        %v991 = vld [vmem:[#allocation2 + $0x168] sm:$0xff]
        %v992 = vld [vmem:[#allocation2 + $0x178] sm:$0xff]
        %v993 = vld [vmem:[#allocation2 + $0x188] sm:$0xff]
        %994 = vmatprep.subr.mxu0 0.0
        %995 = vmatpush1.msra.mxu0 %v984
        %996 = vmatprep.subr.mxu0 0.0
        %997 = vmatpush1.msra.mxu0 %v983
        %998 = vmatprep.subr.mxu0 0.0
        %999 = vmatpush1.msra.mxu0 %v982
        %1000 = vmatprep.subr.mxu0 0.0
        %1001 = vmatpush1.msra.mxu0 %v981
        %1002 = vmatprep.subr.mxu0 0.0
        %1003 = vmatpush1.msra.mxu0 %v980
        %1004 = vmatprep.subr.mxu0 0.0
        %1005 = vmatpush1.msra.mxu0 %v979
        %1006 = vmatprep.subr.mxu0 0.0
        %1007 = vmatpush1.msra.mxu0 %v978
        %1008 = vmatprep.subr.mxu0 0.0
        %1009 = vmatpush1.msra.mxu0 %v977
        %1010 = vmatprep.subr.mxu0 0.0
        %1011 = vmatpush1.msra.mxu0 %v976
        %1012 = vmatprep.subr.mxu0 0.0
        %1013 = vmatpush1.msra.mxu0 %v975
        %1014 = vmatprep.subr.mxu0 0.0
        %1015 = vmatpush1.msra.mxu0 %v974
        %1016 = vmatprep.subr.mxu0 0.0
        %1017 = vmatpush1.msra.mxu0 %v973
        %1018 = vmatprep.subr.mxu0 0.0
        %1019 = vmatpush1.msra.mxu0 %v972
        %1020 = vmatprep.subr.mxu0 0.0
        %1021 = vmatpush1.msra.mxu0 %v971
        %1022 = vmatprep.subr.mxu0 0.0
        %1023 = vmatpush1.msra.mxu0 %v970
        %1024 = vmatprep.subr.mxu0 0.0
        %1025 = vmatpush1.msra.mxu0 %v969
        %1026 = vmatprep.subr.mxu0 0.0
        %1027 = vmatpush2.msra.mxu0 0.0
        %1028 = vmatprep.subr.mxu0 0.0
        %1029 = vmatpush2.msra.mxu0 0.0
        %1030 = vmatprep.subr.mxu0 0.0
        %1031 = vmatpush2.msra.mxu0 0.0
        %1032 = vmatprep.subr.mxu0 0.0
        %1033 = vmatpush2.msra.mxu0 0.0
        %1034 = vmatprep.subr.mxu0 0.0
        %1035 = vmatpush2.msra.mxu0 0.0
        %1036 = vmatprep.subr.mxu0 0.0
        %1037 = vmatpush2.msra.mxu0 0.0
        %1038 = vmatprep.subr.mxu0 0.0
        %1039 = vmatpush2.msra.mxu0 0.0
        %1040 = vmatprep.subr.mxu0 0.0
        %1041 = vmatpush2.msra.mxu0 %v993
        %1042 = vmatprep.subr.mxu0 0.0
        %1043 = vmatpush2.msra.mxu0 %v992
        %1044 = vmatprep.subr.mxu0 0.0
        %1045 = vmatpush2.msra.mxu0 %v991
        %1046 = vmatprep.subr.mxu0 0.0
        %1047 = vmatpush2.msra.mxu0 %v990
        %1048 = vmatprep.subr.mxu0 0.0
        %1049 = vmatpush2.msra.mxu0 %v989
        %1050 = vmatprep.subr.mxu0 0.0
        %1051 = vmatpush2.msra.mxu0 %v988
        %1052 = vmatprep.subr.mxu0 0.0
        %1053 = vmatpush2.msra.mxu0 %v987
        %1054 = vmatprep.subr.mxu0 0.0
        %1055 = vmatpush2.msra.mxu0 %v986
        %1056 = vmatprep.subr.mxu0 0.0
        %1057 = vmatpush2.msra.mxu0 %v985
        %1058 = vmatprep.mubr.f32.mxu0 %v666
        %1059 = vmatmul.mubr.f32.gmra.mxu0 %v586
        %v1060 = vpop.f32.mrf.mxu0
        %v1061 = vadd.f32 %v642, %v1060
        %v1062 = vpop.f32.mrf.mxu0
        %1063 = vmatprep.mubr.f32.mxu0 %v669
        %1064 = vmatmul.mubr.f32.gmra.mxu0 %v588
        %v1065 = vpop.f32.mrf.mxu0
        %v1066 = vadd.f32 %v647, %v1065
        %v1067 = vpop.f32.mrf.mxu0
        %1068 = vmatprep.mubr.f32.mxu0 %v672
        %1069 = vmatmul.mubr.f32.gmra.mxu0 %v590
        %v1070 = vpop.f32.mrf.mxu0
        %v1071 = vadd.f32 %v652, %v1070
        %v1072 = vpop.f32.mrf.mxu0
        %1073 = vmatprep.mubr.f32.mxu0 %v675
        %1074 = vmatmul.mubr.f32.gmra.mxu0 %v592
        %v1075 = vpop.f32.mrf.mxu0
        %v1076 = vadd.f32 %v657, %v1075
        %v1077 = vpop.f32.mrf.mxu0
        %1078 = vmatprep.mubr.f32.mxu0 %v678
        %1079 = vmatmul.mubr.f32.gmra.mxu0 %v594
        %v1080 = vpop.f32.mrf.mxu0
        %v1081 = vadd.f32 %v662, %v1080
        %v1082 = vpop.f32.mrf.mxu0
        %1083 = vdwg.mxu0
        %v1084 = vmul.f32 %v1061, %v1061
        %v1085 = vmul.f32 %v1066, %v1066
        %v1086 = vmul.f32 %v1071, %v1071
        %v1087 = vmul.f32 %v1076, %v1076
        %v1088 = vmul.f32 %v1081, %v1081
        %v1090 = vsel %vm293, %v1084, 0
        %v1093 = vsel %vm293, %v1085, 0
        %v1096 = vsel %vm293, %v1086, 0
        %v1099 = vsel %vm293, %v1087, 0
        %v1102 = vsel %vm293, %v1088, 0
        %1104 = vmatprep.subr.mxu0 0.0
        %1105 = vmatpush1.msra.mxu0 0.0
        %1106 = vmatprep.subr.mxu0 0.0
        %1107 = vmatpush1.msra.mxu0 0.0
        %1108 = vmatprep.subr.mxu0 0.0
        %1109 = vmatpush1.msra.mxu0 0.0
        %1110 = vmatprep.subr.mxu0 0.0
        %1111 = vmatpush1.msra.mxu0 %v613
        %1112 = vmatprep.subr.mxu0 0.0
        %1113 = vmatpush1.msra.mxu0 %v612
        %1114 = vmatprep.subr.mxu0 0.0
        %1115 = vmatpush1.msra.mxu0 %v611
        %1116 = vmatprep.subr.mxu0 0.0
        %1117 = vmatpush1.msra.mxu0 %v610
        %1118 = vmatprep.subr.mxu0 0.0
        %1119 = vmatpush1.msra.mxu0 %v609
        %1120 = vmatprep.subr.mxu0 0.0
        %1121 = vmatpush1.msra.mxu0 %v608
        %1122 = vmatprep.subr.mxu0 0.0
        %1123 = vmatpush1.msra.mxu0 %v607
        %1124 = vmatprep.subr.mxu0 0.0
        %1125 = vmatpush1.msra.mxu0 %v606
        %1126 = vmatprep.subr.mxu0 0.0
        %1127 = vmatpush1.msra.mxu0 %v605
        %1128 = vmatprep.subr.mxu0 0.0
        %1129 = vmatpush1.msra.mxu0 %v604
        %1130 = vmatprep.subr.mxu0 0.0
        %1131 = vmatpush1.msra.mxu0 %v603
        %1132 = vmatprep.subr.mxu0 0.0
        %1133 = vmatpush1.msra.mxu0 %v602
        %1134 = vmatprep.subr.mxu0 0.0
        %1135 = vmatpush1.msra.mxu0 %v601
        %1136 = vmatprep.subr.mxu0 0.0
        %1137 = vmatpush2.msra.mxu0 0.0
        %1138 = vmatprep.subr.mxu0 0.0
        %1139 = vmatpush2.msra.mxu0 0.0
        %1140 = vmatprep.subr.mxu0 0.0
        %1141 = vmatpush2.msra.mxu0 0.0
        %1142 = vmatprep.subr.mxu0 0.0
        %1143 = vmatpush2.msra.mxu0 0.0
        %1144 = vmatprep.subr.mxu0 0.0
        %1145 = vmatpush2.msra.mxu0 0.0
        %1146 = vmatprep.subr.mxu0 0.0
        %1147 = vmatpush2.msra.mxu0 0.0
        %1148 = vmatprep.subr.mxu0 0.0
        %1149 = vmatpush2.msra.mxu0 0.0
        %1150 = vmatprep.subr.mxu0 0.0
        %1151 = vmatpush2.msra.mxu0 0.0
        %1152 = vmatprep.subr.mxu0 0.0
        %1153 = vmatpush2.msra.mxu0 0.0
        %1154 = vmatprep.subr.mxu0 0.0
        %1155 = vmatpush2.msra.mxu0 0.0
        %1156 = vmatprep.subr.mxu0 0.0
        %1157 = vmatpush2.msra.mxu0 0.0
        %1158 = vmatprep.subr.mxu0 0.0
        %1159 = vmatpush2.msra.mxu0 0.0
        %1160 = vmatprep.subr.mxu0 0.0
        %1161 = vmatpush2.msra.mxu0 0.0
        %1162 = vmatprep.subr.mxu0 0.0
        %1163 = vmatpush2.msra.mxu0 0.0
        %1164 = vmatprep.subr.mxu0 0.0
        %1165 = vmatpush2.msra.mxu0 0.0
        %1166 = vmatprep.subr.mxu0 0.0
        %1167 = vmatpush2.msra.mxu0 0.0
        %1168 = vmatprep.mubr.f32.mxu0 0.0
        %1169 = vmatmul.mubr.f32.gmra.mxu0 %v1090
        %v1170 = vpop.f32.mrf.mxu0
        %v1171 = vadd.f32 0.0, %v1170
        %v1172 = vpop.f32.mrf.mxu0
        %1173 = vmatprep.mubr.f32.mxu0 0.0
        %1174 = vmatmul.mubr.f32.gmra.mxu0 %v1093
        %v1175 = vpop.f32.mrf.mxu0
        %v1176 = vadd.f32 0.0, %v1175
        %v1177 = vpop.f32.mrf.mxu0
        %1178 = vmatprep.mubr.f32.mxu0 0.0
        %1179 = vmatmul.mubr.f32.gmra.mxu0 %v1096
        %v1180 = vpop.f32.mrf.mxu0
        %v1181 = vadd.f32 0.0, %v1180
        %v1182 = vpop.f32.mrf.mxu0
        %1183 = vmatprep.mubr.f32.mxu0 0.0
        %1184 = vmatmul.mubr.f32.gmra.mxu0 %v1099
        %v1185 = vpop.f32.mrf.mxu0
        %v1186 = vadd.f32 0.0, %v1185
        %v1187 = vpop.f32.mrf.mxu0
        %1188 = vmatprep.mubr.f32.mxu0 0.0
        %1189 = vmatmul.mubr.f32.gmra.mxu0 %v1102
        %v1190 = vpop.f32.mrf.mxu0
        %v1191 = vadd.f32 0.0, %v1190
        %v1192 = vpop.f32.mrf.mxu0
        %1193 = vdwg.mxu0
        %v1194 = vmax.f32 %v1171, 1e-06
        %v1195 = vmax.f32 %v1176, 1e-06
        %v1196 = vmax.f32 %v1181, 1e-06
        %v1197 = vmax.f32 %v1186, 1e-06
        %v1198 = vmax.f32 %v1191, 1e-06
        %v1199 = vlog2.pop %v1194
        %v1200 = vmul.f32 %v1199, 0.6931472
        %v1201 = vlog2.pop %v1195
        %v1202 = vmul.f32 %v1201, 0.6931472
        %v1203 = vlog2.pop %v1196
        %v1204 = vmul.f32 %v1203, 0.6931472
        %v1205 = vlog2.pop %v1197
        %v1206 = vmul.f32 %v1205, 0.6931472
        %v1207 = vlog2.pop %v1198
        %v1208 = vmul.f32 %v1207, 0.6931472
        %v1209 = vmul.f32 %v895, %v1200
        %v1210 = vmul.f32 %v896, %v1202
        %v1211 = vmul.f32 %v897, %v1204
        %v1212 = vmul.f32 %v898, %v1206
        %v1213 = vmul.f32 %v899, %v1208
        %v1214 = vsel %vm905, %v1209, 0.0
        %1215 = vadd.xlane.f32.xlu0 %v1214
        %v1216 = vpop.xlane.xlu0 %1215
        %v1217 = vsel %vm905, %v1210, 0.0
        %1218 = vadd.xlane.f32.xlu0 %v1217
        %v1219 = vpop.xlane.xlu0 %1218
        %v1220 = vsel %vm905, %v1211, 0.0
        %1221 = vadd.xlane.f32.xlu0 %v1220
        %v1222 = vpop.xlane.xlu0 %1221
        %v1223 = vsel %vm905, %v1212, 0.0
        %1224 = vadd.xlane.f32.xlu0 %v1223
        %v1225 = vpop.xlane.xlu0 %1224
        %v1226 = vsel %vm905, %v1213, 0.0
        %1227 = vadd.xlane.f32.xlu0 %v1226
        %v1228 = vpop.xlane.xlu0 %1227
        %v1229 = vadd.f32 %v1216, %v1219
        %v1230 = vadd.f32 %v1229, %v1222
        %v1231 = vadd.f32 %v1230, %v1225
        %v1232 = vadd.f32 %v1231, %v1228
        %v1233 = vrot.slane %v1232, 4
        %v1234 = vadd.f32 %v1232, %v1233
        %v1235 = vrot.slane %v1234, 2
        %v1236 = vadd.f32 %v1234, %v1235
        %v1237 = vrot.slane %v1236, 1
        %v1238 = vadd.f32 %v1236, %v1237
        %v1239 = vmul.f32 %v932, %v1200
        %v1240 = vmul.f32 %v933, %v1202
        %v1241 = vmul.f32 %v934, %v1204
        %v1242 = vmul.f32 %v935, %v1206
        %v1243 = vmul.f32 %v936, %v1208
        %v1244 = vsel %vm905, %v1239, 0.0
        %1245 = vadd.xlane.f32.xlu0 %v1244
        %v1246 = vpop.xlane.xlu0 %1245
        %v1247 = vsel %vm905, %v1240, 0.0
        %1248 = vadd.xlane.f32.xlu0 %v1247
        %v1249 = vpop.xlane.xlu0 %1248
        %v1250 = vsel %vm905, %v1241, 0.0
        %1251 = vadd.xlane.f32.xlu0 %v1250
        %v1252 = vpop.xlane.xlu0 %1251
        %v1253 = vsel %vm905, %v1242, 0.0
        %1254 = vadd.xlane.f32.xlu0 %v1253
        %v1255 = vpop.xlane.xlu0 %1254
        %v1256 = vsel %vm905, %v1243, 0.0
        %1257 = vadd.xlane.f32.xlu0 %v1256
        %v1258 = vpop.xlane.xlu0 %1257
        %v1259 = vadd.f32 %v1246, %v1249
        %v1260 = vadd.f32 %v1259, %v1252
        %v1261 = vadd.f32 %v1260, %v1255
        %v1262 = vadd.f32 %v1261, %v1258
        %v1263 = vrot.slane %v1262, 4
        %v1264 = vadd.f32 %v1262, %v1263
        %v1265 = vrot.slane %v1264, 2
        %v1266 = vadd.f32 %v1264, %v1265
        %v1267 = vrot.slane %v1266, 1
        %v1268 = vadd.f32 %v1266, %v1267
        %v1269 = vsel %vm967, %v1238, %v1268
        %1275 = vrot.lane.b32.xlu0 %v1200, 2
        %v1276 = vpop.permute.xlu0 %1275
        %1277 = vrot.lane.b32.xlu0 %v1202, 2
        %v1278 = vpop.permute.xlu0 %1277
        %1279 = vrot.lane.b32.xlu0 %v1204, 2
        %v1280 = vpop.permute.xlu0 %1279
        %1281 = vrot.lane.b32.xlu0 %v1206, 2
        %v1282 = vpop.permute.xlu0 %1281
        %1283 = vrot.lane.b32.xlu0 %v1208, 2
        %v1284 = vpop.permute.xlu0 %1283
        %v1290 = vsel %vm905, %v886, %v1276
        %v1291 = vsel %vm905, %v888, %v1278
        %v1292 = vsel %vm905, %v890, %v1280
        %v1293 = vsel %vm905, %v892, %v1282
        %v1294 = vsel %vm905, %v894, %v1284
        %vm1295 = vcmask 31744
        %1296 = vst.msk [vmem:[%s291] sm:$0xff] %vm1295, %v1290
        %1297 = vst.msk [vmem:[%s291 + $0x8] sm:$0xff] %vm1295, %v1291
        %1298 = vst.msk [vmem:[%s291 + $0x10] sm:$0xff] %vm1295, %v1292
        %1299 = vst.msk [vmem:[%s291 + $0x18] sm:$0xff] %vm1295, %v1293
        %1300 = vst.msk [vmem:[%s291 + $0x20] sm:$0xff] %vm1295, %v1294
        %1302 = vrot.lane.b32.xlu0 %v1269, 1
        %v1303 = vpop.permute.xlu0 %1302
        %vm1305 = vcmask 7168
        %v1306 = vsel %vm1305, %v968, %v1303
        %v1307 = vld [vmem:[%s5] sm:$0x3]
        %1309 = vset.pattern.permute.xlu0 0
        %1310 = vperm.xlu0 %1309, %v1307
        %v1311 = vpop.permute.xlu0 %1310
        %v1313 = vadd.f32 %v1306, %v1311
        %vm1314 = vcmask 9216
        %v1315 = vsel %vm1314, %v1313, -inf
        %v1316 = vrot.slane %v1315, 4
        %v1317 = vmax.f32 %v1315, %v1316
        %v1318 = vrot.slane %v1317, 2
        %v1319 = vmax.f32 %v1317, %v1318
        %v1320 = vrot.slane %v1319, 1
        %v1321 = vmax.f32 %v1319, %v1320
        %v1322 = vsub.f32 %v1313, %v1321
        %v1323 = vmul.f32 %v1322, 1.442695
        %v1324 = vpow.pop %v1323
        %v1325 = vsel %vm1314, %v1324, 0.0
        %v1326 = vrot.slane %v1325, 4
        %v1327 = vadd.f32 %v1325, %v1326
        %v1328 = vrot.slane %v1327, 2
        %v1329 = vadd.f32 %v1327, %v1328
        %v1330 = vrot.slane %v1329, 1
        %v1331 = vadd.f32 %v1329, %v1330
        %v1332 = vlog2.pop %v1331
        %v1333 = vmul.f32 %v1332, 0.6931472
        %v1334 = vadd.f32 %v1321, %v1333
        %v1335 = vsub.f32 %v1313, %v1334
        %1336 = vst.msk [vmem:[%s273] sm:$0x3] %vm1314, %v1335
        %s1337 = sand.u32 %s161, 1
        %s1338 = scalar_lea.sflag [#allocation4], %s1337
        %s1339 = sand.u32 %s161, 1
        %s1340 = smul.addr %s1339, 2
        %s1341 = scalar_lea.vmem [#allocation3], %s1340
        %p1342 = scmp.lt.s32.totalorder %s22, 1
        %s1343 = scalar_select %p1342, %s22, 1
        %s1344 = smul.addr %s1343, 5
        %s1345 = smul.addr %s1344, 8
        %s1346 = scalar_lea.vmem %s7, %s1345
        // Predicated region
        $region45: #{tpu_custom_call.1} parent=43 // pred_check
          %p1347 = pneg %p171
        $region46: #{tpu_custom_call.1} parent=43 // pred_check_branch
          %1349 = sbr.rel (%p1347) target = $region48
        $region47: #{tpu_custom_call.1} parent=43 // pred_region
          %s1351 = ssub.s32 32, 32
          %1352 = vsyncadd %s1338, %s1351
          %s1353 = smul.addr %s22, 32
          %s1354 = scalar_lea.hbm %s6, %s1353
          %s1356 = sshll.u32 %s1341, 4
          %s1357 = int_to_ptr.vmem [resolvable:$true] %s1356
          %1359 = dma.vmem_to_hbm [thread:$0]  %s1357, 32, %s1354, %s1338
        $region48: #{tpu_custom_call.1} parent=43 // pred_fallthru
          _
        // Predicated region
        $region49: #{tpu_custom_call.1} parent=43 // pred_check
          %p1360 = pneg %p197
        $region50: #{tpu_custom_call.1} parent=43 // pred_check_branch
          %1362 = sbr.rel (%p1360) target = $region52
        $region51: #{tpu_custom_call.1} parent=43 // pred_region
          _
        $region52: #{tpu_custom_call.1} parent=43 // pred_fallthru
          _
      $region44: #{tpu_custom_call.1} parent=5 // pred_fallthru
        _
      %p1363 = scmp.le.s32.totalorder 2, %s17
      // Predicated region
      $region53: #{tpu_custom_call.1} parent=5 // pred_check
        %p1364 = pneg %p1363
      $region54: #{tpu_custom_call.1} parent=5 // pred_check_branch
        %1366 = sbr.rel (%p1364) target = $region56
      $region55: #{tpu_custom_call.1} parent=5 // pred_region
        %s1367 = ssub.s32 %s17, 2
        // Predicated region
        $region57: #{tpu_custom_call.1} parent=55 // pred_check
          %p1368 = pneg %p177
        $region58: #{tpu_custom_call.1} parent=55 // pred_check_branch
          %1370 = sbr.rel (%p1368) target = $region60
        $region59: #{tpu_custom_call.1} parent=55 // pred_region
          %s1371 = sand.u32 %s162, 1
          %s1372 = scalar_lea.sflag [#allocation4], %s1371
          %s1373 = sand.u32 %s162, 1
          %s1374 = smul.addr %s1373, 2
          %s1375 = scalar_lea.vmem [#allocation3], %s1374
          %1376 = dma.done %s1372, 32
        $region60: #{tpu_custom_call.1} parent=55 // pred_fallthru
          _
        // Predicated region
        $region61: #{tpu_custom_call.1} parent=55 // pred_check
          %p1377 = pneg %p203
        $region62: #{tpu_custom_call.1} parent=55 // pred_check_branch
          %1379 = sbr.rel (%p1377) target = $region64
        $region63: #{tpu_custom_call.1} parent=55 // pred_region
          %p1380 = scmp.lt.s32.totalorder %s23, 1
          %s1381 = scalar_select %p1380, %s23, 1
          %s1382 = smul.addr %s1381, 5
          %s1383 = smul.addr %s1382, 8
          %s1384 = scalar_lea.vmem %s7, %s1383
        $region64: #{tpu_custom_call.1} parent=55 // pred_fallthru
          _
      $region56: #{tpu_custom_call.1} parent=5 // pred_fallthru
        _
    $region6: #{tpu_custom_call.1} parent=1 // loop_footer
      %s21 = sadd.s32 1, %s17
    $region7: #{tpu_custom_call.1} parent=1 // loop_footer_branch
      %16 = sbr.rel target = $region3
    $region8: #{tpu_custom_call.1} parent=1 // loop_exit
      _
    %1385 = vsyncpa [#allocation4], 1
    %s1386 = scalar_lea.sflag [#allocation4], 1
    %1387 = vsyncpa %s1386, 1

</llo_original>
